<compile_context>
chip_gen: v7x
topology: tpu7x:2x2x1
jax: 0.10.0
libtpu: 0.0.40
codegen_flags: <defaults>
</compile_context>

<pallas_src>
import functools

import jax
import jax.numpy as jnp
from jax import lax
from jax.experimental import pallas as pl
from jax.experimental.pallas import tpu as pltpu


# anchor-constant plane indices (precomputed on host, fetched once)
_AX1, _AY1, _AX2, _AY2, _AREA, _ACX, _ACY, _IAW, _IAH, _LAW, _LAH, _VAL = range(12)


def _multibox_loss_kernel(
    gt_ref,      # SMEM (B, M*5) f32 scalar-prefetch: per object [x1,y1,x2,y2,label]
    pc_ref,      # VMEM (1, C, S, 128) f32
    ploc_ref,    # VMEM (1, 4, S, 128) f32
    anc_ref,     # VMEM (12, S, 128)   f32 anchor constants (constant index_map)
    out_ref,     # VMEM (1, 1, 128)    f32: lanes 0..3 = cls_pos, cls_hard, loc, npos
    *, num_objects, pos_thr, neg_pos_ratio, num_probe_steps,
):
    f32 = jnp.float32
    b = pl.program_id(0)

    pc = pc_ref[0]          # (C, S, 128)
    ploc = ploc_ref[0]      # (4, S, 128)

    ax1, ay1 = anc_ref[_AX1], anc_ref[_AY1]
    ax2, ay2 = anc_ref[_AX2], anc_ref[_AY2]
    area_a = anc_ref[_AREA]
    acx, acy = anc_ref[_ACX], anc_ref[_ACY]
    inv_aw10, inv_ah10 = anc_ref[_IAW], anc_ref[_IAH]
    log_aw, log_ah = anc_ref[_LAW], anc_ref[_LAH]
    valid = anc_ref[_VAL]                      # (S, 128) 1.0 = real anchor, 0.0 = pad
    valid_b = valid > 0.5

    C, S, L = pc.shape
    # linear anchor index (f32 is exact for any realistic anchor count)
    lin = (lax.broadcasted_iota(jnp.int32, (S, L), 0) * L
           + lax.broadcasted_iota(jnp.int32, (S, L), 1)).astype(f32)

    # ---------------- target assignment: loop over M objects ----------------
    def obj_body(m, carry):
        best_iou, gx1, gy1, gx2, gy2, glab, pos = carry
        base = m * 5
        bx1 = gt_ref[b, base + 0]
        by1 = gt_ref[b, base + 1]
        bx2 = gt_ref[b, base + 2]
        by2 = gt_ref[b, base + 3]
        lab = gt_ref[b, base + 4]
        area_b = (bx2 - bx1) * (by2 - by1)

        ix1 = jnp.maximum(ax1, bx1)
        iy1 = jnp.maximum(ay1, by1)
        ix2 = jnp.minimum(ax2, bx2)
        iy2 = jnp.minimum(ay2, by2)
        inter = jnp.maximum(ix2 - ix1, 0.0) * jnp.maximum(iy2 - iy1, 0.0)
        union = jnp.maximum(area_a + area_b - inter, 1e-10)
        iou = inter / union                        # exact divide (threshold-sensitive)
        iou = jnp.where(valid_b, iou, -1.0)        # pads never win / never positive

        # force the best (first-tie) anchor of this object to IoU 1.0
        max_iou = jnp.max(iou)
        best_idx = jnp.min(jnp.where(iou == max_iou, lin, f32(1e9)))
        iou = jnp.where(lin == best_idx, 1.0, iou)

        # running best object per anchor (strict > : first object wins ties)
        better = iou > best_iou
        best_iou = jnp.where(better, iou, best_iou)
        gx1 = jnp.where(better, bx1, gx1)
        gy1 = jnp.where(better, by1, gy1)
        gx2 = jnp.where(better, bx2, gx2)
        gy2 = jnp.where(better, by2, gy2)
        glab = jnp.where(better, lab, glab)
        pos = jnp.maximum(pos, (iou >= pos_thr).astype(f32))
        return best_iou, gx1, gy1, gx2, gy2, glab, pos

    zeros = jnp.zeros((S, L), f32)
    init = (jnp.full((S, L), -2.0, f32), zeros, zeros, zeros, zeros, zeros, zeros)
    _, gx1, gy1, gx2, gy2, glab, pos = lax.fori_loop(0, num_objects, obj_body, init)

    num_pos = jnp.sum(pos)
    gt_cls = (glab.astype(jnp.int32) + 1) * pos.astype(jnp.int32)      # (S, L)

    # SSD encode (variances 0.1 / 0.2) with host-precomputed reciprocals / logs
    gcx = (gx1 + gx2) * 0.5
    gcy = (gy1 + gy2) * 0.5
    enc_cx = (gcx - acx) * inv_aw10
    enc_cy = (gcy - acy) * inv_ah10
    enc_w = (jnp.log(jnp.maximum(gx2 - gx1, 1e-12)) - log_aw) * 5.0
    enc_h = (jnp.log(jnp.maximum(gy2 - gy1, 1e-12)) - log_ah) * 5.0

    # ---------------- classification loss (cross entropy per anchor) ----------------
    mmax = jnp.max(pc, axis=0)                                          # (S, L)
    lse = jnp.log(jnp.sum(jnp.exp(pc - mmax[None]), axis=0)) + mmax
    gate = jnp.zeros((S, L), f32)
    for c in range(C):                                                  # small static C
        gate = gate + jnp.where(gt_cls == c, pc[c], 0.0)
    ce = (lse - gate) * valid                                           # (S, L)

    cls_pos_sum = jnp.sum(ce * pos)
    neg = ce * (1.0 - pos)

    # ---- hard negative mining: 9-ary value search for the k-th largest neg CE ----
    # top-k sum = sum(neg[neg > hi]) + (k - count(neg > hi)) * hi, hi -> k-th value.
    k_hard = f32(neg_pos_ratio) * num_pos
    probe = (lax.broadcasted_iota(jnp.int32, (8, L), 0).astype(f32) + 1.0) * (1.0 / 9.0)
    lo = f32(0.0)
    hi = jnp.max(neg)
    for _ in range(num_probe_steps):                                    # short serial chain
        mids = lo + (hi - lo) * probe                                   # (8, L) rows const
        cmp = (neg[None, :, :] > mids[:, None, :]).astype(f32)          # (8, S, L)
        cnts = jnp.sum(jnp.sum(cmp, axis=2), axis=1, keepdims=True)     # (8, 1)
        geq = cnts >= k_hard
        lo = jnp.max(jnp.where(geq, mids[:, 0:1], lo))
        hi = jnp.min(jnp.where(geq, hi, mids[:, 0:1]))
    sel = (neg > hi).astype(f32)
    cnt_gt = jnp.sum(sel)
    sum_gt = jnp.sum(neg * sel)
    cls_hard_sum = sum_gt + jnp.maximum(k_hard - cnt_gt, 0.0) * hi

    # ---------------- localization loss (L1, matching nn.L1Loss in the module) ----------------
    loc_abs = (jnp.abs(ploc[0] - enc_cx) + jnp.abs(ploc[1] - enc_cy)
               + jnp.abs(ploc[2] - enc_w) + jnp.abs(ploc[3] - enc_h)) * pos
    loc_sum = jnp.sum(loc_abs)

    # single lane-dense output row: [cls_pos, cls_hard, loc_sum, num_pos, 0, ...]
    lane = lax.broadcasted_iota(jnp.int32, (1, 1, 128), 2)
    out_ref[...] = (jnp.where(lane == 0, cls_pos_sum, 0.0)
                    + jnp.where(lane == 1, cls_hard_sum, 0.0)
                    + jnp.where(lane == 2, loc_sum, 0.0)
                    + jnp.where(lane == 3, num_pos, 0.0))


def multibox_loss(pred_cls, pred_loc, gt_boxes, gt_labels, center_anchor,
                  neg_pos_ratio=3, alpha=10.0, positive_threshold=0.5,
                  num_probe_steps=8):
    """Pallas implementation of MultiBoxLoss.forward (incl. TargetMaker)."""
    B, A, C = pred_cls.shape
    assert pred_loc.shape == (B, A, 4)
    assert center_anchor.shape == (A, 4)
    M = gt_boxes.shape[1]
    f32 = jnp.float32

    # dense (S, 128) anchor tiles; S padded to a multiple of 8 for full vregs
    S = ((pl.cdiv(A, 128) + 7) // 8) * 8
    A_pad = S * 128
    pad = A_pad - A

    pc = jnp.transpose(pred_cls.astype(f32), (0, 2, 1))            # (B, C, A)
    pc = jnp.pad(pc, ((0, 0), (0, 0), (0, pad))).reshape(B, C, S, 128)
    ploc = jnp.transpose(pred_loc.astype(f32), (0, 2, 1))          # (B, 4, A)
    ploc = jnp.pad(ploc, ((0, 0), (0, 0), (0, pad))).reshape(B, 4, S, 128)

    # batch-invariant anchor constants, computed once on the host / by XLA
    anc = center_anchor.astype(f32)
    anc = jnp.concatenate(
        [anc, jnp.tile(jnp.array([[0.5, 0.5, 1.0, 1.0]], f32), (pad, 1))], axis=0)
    acx, acy, aw, ah = anc[:, 0], anc[:, 1], anc[:, 2], anc[:, 3]
    ax1, ay1 = acx - aw * 0.5, acy - ah * 0.5
    ax2, ay2 = acx + aw * 0.5, acy + ah * 0.5
    area_a = (ax2 - ax1) * (ay2 - ay1)
    valid = (jnp.arange(A_pad) < A).astype(f32)
    planes = jnp.stack(
        [ax1, ay1, ax2, ay2, area_a, acx, acy,
         10.0 / aw, 10.0 / ah, jnp.log(aw), jnp.log(ah), valid],
        axis=0).reshape(12, S, 128)

    # gt boxes + labels -> SMEM scalars: per object [x1, y1, x2, y2, label]
    gt_data = jnp.concatenate(
        [gt_boxes.astype(f32), gt_labels.astype(f32)[..., None]], axis=-1
    ).reshape(B, M * 5)

    kernel = functools.partial(
        _multibox_loss_kernel,
        num_objects=M,
        pos_thr=positive_threshold,
        neg_pos_ratio=neg_pos_ratio,
        num_probe_steps=num_probe_steps)

    grid_spec = pltpu.PrefetchScalarGridSpec(
        num_scalar_prefetch=1,
        grid=(B,),
        in_specs=[
            pl.BlockSpec((1, C, S, 128), lambda b, gt: (b, 0, 0, 0)),
            pl.BlockSpec((1, 4, S, 128), lambda b, gt: (b, 0, 0, 0)),
            pl.BlockSpec((12, S, 128), lambda b, gt: (0, 0, 0)),   # fetched once
        ],
        out_specs=pl.BlockSpec((1, 1, 128), lambda b, gt: (b, 0, 0)),
    )

    sums = pl.pallas_call(
        kernel,
        grid_spec=grid_spec,
        out_shape=jax.ShapeDtypeStruct((B, 1, 128), f32),
        compiler_params=pltpu.CompilerParams(
            dimension_semantics=("parallel",),
            vmem_limit_bytes=48 * 1024 * 1024),
    )(gt_data, pc, ploc, planes)

    cls_pos = jnp.sum(sums[:, 0, 0])
    cls_hard = jnp.sum(sums[:, 0, 1])
    loc_sum = jnp.sum(sums[:, 0, 2])
    num_pos_total = jnp.sum(sums[:, 0, 3])
    denom = jnp.maximum(num_pos_total, 1.0)   # guard; each gt object forces >=1 positive
    cls_loss = (cls_pos + cls_hard) / denom
    loc_loss = alpha * loc_sum / (denom * 4.0)
    return cls_loss + loc_loss, (cls_loss, loc_loss)


# ----------------------- pure-JAX reference (for verification) -----------------------
def multibox_loss_ref(pred_cls, pred_loc, gt_boxes, gt_labels, center_anchor,
                      neg_pos_ratio=3, alpha=10.0, thr=0.5):
    B, A, C = pred_cls.shape
    M = gt_boxes.shape[1]
    acx, acy, aw, ah = (center_anchor[:, i] for i in range(4))
    ax1, ay1, ax2, ay2 = acx - aw / 2, acy - ah / 2, acx + aw / 2, acy + ah / 2

    def per_image(boxes, labels):
        ix1 = jnp.maximum(ax1[:, None], boxes[None, :, 0])
        iy1 = jnp.maximum(ay1[:, None], boxes[None, :, 1])
        ix2 = jnp.minimum(ax2[:, None], boxes[None, :, 2])
        iy2 = jnp.minimum(ay2[:, None], boxes[None, :, 3])
        inter = jnp.maximum(ix2 - ix1, 0) * jnp.maximum(iy2 - iy1, 0)
        area_a = (ax2 - ax1) * (ay2 - ay1)
        area_b = (boxes[:, 2] - boxes[:, 0]) * (boxes[:, 3] - boxes[:, 1])
        iou = inter / (area_a[:, None] + area_b[None, :] - inter)
        best_anchor = jnp.argmax(iou, axis=0)
        iou = iou.at[best_anchor, jnp.arange(M)].set(1.0)
        pos = jnp.any(iou >= thr, axis=1)
        best_obj = jnp.argmax(iou, axis=1)
        cls = (labels[best_obj] + 1) * pos.astype(jnp.int32)
        gb = boxes[best_obj]
        gcx = (gb[:, 0] + gb[:, 2]) / 2
        gcy = (gb[:, 1] + gb[:, 3]) / 2
        gw = gb[:, 2] - gb[:, 0]
        gh = gb[:, 3] - gb[:, 1]
        enc = jnp.stack([(gcx - acx) / (aw / 10), (gcy - acy) / (ah / 10),
                         jnp.log(gw / aw) * 5, jnp.log(gh / ah) * 5], axis=1)
        return cls, enc, pos

    gt_cls, gt_loc, gt_mask = jax.vmap(per_image)(gt_boxes, gt_labels)
    num_pos = gt_mask.sum(axis=1)
    logz = jax.nn.logsumexp(pred_cls, axis=-1)
    gate = jnp.take_along_axis(pred_cls, gt_cls[..., None], axis=-1)[..., 0]
    ce = logz - gate
    posf = gt_mask.astype(jnp.float32)
    cls_pos = (ce * posf).sum()
    neg = ce * (1 - posf)
    neg_sorted = -jnp.sort(-neg, axis=1)
    ranks = jnp.arange(A)[None, :]
    hard = ranks < (neg_pos_ratio * num_pos)[:, None]
    cls_hard = (neg_sorted * hard).sum()
    npt = num_pos.sum().astype(jnp.float32)
    cls_loss = (cls_hard + cls_pos) / npt
    loc_abs = jnp.abs(pred_loc - gt_loc) * posf[..., None]
    loc_loss = alpha * loc_abs.sum() / (npt * 4)
    return cls_loss + loc_loss, (cls_loss, loc_loss)


if __name__ == "__main__":
    key = jax.random.PRNGKey(0)
    B, grid_side, C, M = 2, 8, 8, 3

    # deterministic anchors: 8x8 grid of centers, 3 scales -> A = 192
    # (not a multiple of 128 on purpose: exercises the lane-padding / valid-mask path)
    ys, xs = jnp.meshgrid(jnp.arange(grid_side), jnp.arange(grid_side), indexing="ij")
    cx = (xs.reshape(-1).astype(jnp.float32) + 0.5) / grid_side
    cy = (ys.reshape(-1).astype(jnp.float32) + 0.5) / grid_side
    anchors = []
    for s in (0.15, 0.30, 0.45):
        anchors.append(jnp.stack([cx, cy, jnp.full_like(cx, s), jnp.full_like(cx, s)], axis=1))
    center_anchor = jnp.concatenate(anchors, axis=0).astype(jnp.float32)  # (192, 4)
    A = center_anchor.shape[0]

    k1, k2, k3, k4, k5 = jax.random.split(key, 5)
    pred_cls = jax.random.normal(k1, (B, A, C), jnp.float32)
    pred_loc = jax.random.normal(k2, (B, A, 4), jnp.float32) * 0.1
    ctr = jax.random.uniform(k3, (B, M, 2), minval=0.2, maxval=0.8)
    wh = jax.random.uniform(k4, (B, M, 2), minval=0.1, maxval=0.4)
    gt_boxes = jnp.concatenate([ctr - wh / 2, ctr + wh / 2], axis=-1).astype(jnp.float32)
    gt_labels = jax.random.randint(k5, (B, M), 0, C - 1).astype(jnp.int32)

    total, (cls_l, loc_l) = multibox_loss(pred_cls, pred_loc, gt_boxes, gt_labels, center_anchor)
    jax.block_until_ready(total)

    total_ref, (cls_ref, loc_ref) = multibox_loss_ref(
        pred_cls, pred_loc, gt_boxes, gt_labels, center_anchor)
    assert bool(jnp.isfinite(total)), "non-finite loss"
    assert jnp.allclose(total, total_ref, rtol=1e-3, atol=1e-3), (total, total_ref)
    assert jnp.allclose(cls_l, cls_ref, rtol=1e-3, atol=1e-3), (cls_l, cls_ref)
    assert jnp.allclose(loc_l, loc_ref, rtol=1e-3, atol=1e-3), (loc_l, loc_ref)

    print("KERNEL_OK")
</pallas_src>

<mosaic_0001>
module attributes {stable_mosaic.version = 11 : i64} {
  func.func @_multibox_loss_kernel(%arg0: i32, %arg1: memref<2x15xf32, #tpu.memory_space<smem>>, %arg2: memref<1x8x8x128xf32, #tpu.memory_space<vmem>>, %arg3: memref<1x4x8x128xf32, #tpu.memory_space<vmem>>, %arg4: memref<12x8x128xf32, #tpu.memory_space<vmem>>, %arg5: memref<1x1x128xf32, #tpu.memory_space<vmem>>) attributes {dimension_semantics = [#tpu.dimension_semantics<parallel>], iteration_bounds = array<i64: 2>, scalar_prefetch = 1 : i64, scratch_operands = 0 : i64, tpu.core_type = #tpu.core_type<tc>, window_params = [{transform_indices = @transform_0, window_bounds = array<i64: 1, 8, 8, 128>}, {transform_indices = @transform_1, window_bounds = array<i64: 1, 4, 8, 128>}, {pipeline_mode = #tpu.pipeline_mode<synchronous>, transform_indices = @transform_2, window_bounds = array<i64: 12, 8, 128>}, {transform_indices = @transform_3, window_bounds = array<i64: 1, 1, 128>}]} {
    %c0 = arith.constant 0 : index
    %c0_0 = arith.constant 0 : index
    %c0_1 = arith.constant 0 : index
    %c0_2 = arith.constant 0 : index
    %0 = vector.load %arg2[%c0, %c0_0, %c0_1, %c0_2] : memref<1x8x8x128xf32, #tpu.memory_space<vmem>>, vector<1x8x8x128xf32>
    %1 = vector.shape_cast %0 : vector<1x8x8x128xf32> to vector<8x8x128xf32>
    %c0_3 = arith.constant 0 : index
    %c0_4 = arith.constant 0 : index
    %c0_5 = arith.constant 0 : index
    %c0_6 = arith.constant 0 : index
    %2 = vector.load %arg3[%c0_3, %c0_4, %c0_5, %c0_6] : memref<1x4x8x128xf32, #tpu.memory_space<vmem>>, vector<1x4x8x128xf32>
    %3 = vector.shape_cast %2 : vector<1x4x8x128xf32> to vector<4x8x128xf32>
    %c0_7 = arith.constant 0 : index
    %c0_8 = arith.constant 0 : index
    %c0_9 = arith.constant 0 : index
    %4 = vector.load %arg4[%c0_7, %c0_8, %c0_9] : memref<12x8x128xf32, #tpu.memory_space<vmem>>, vector<1x8x128xf32>
    %5 = vector.shape_cast %4 : vector<1x8x128xf32> to vector<8x128xf32>
    %c1 = arith.constant 1 : index
    %c0_10 = arith.constant 0 : index
    %c0_11 = arith.constant 0 : index
    %6 = vector.load %arg4[%c1, %c0_10, %c0_11] : memref<12x8x128xf32, #tpu.memory_space<vmem>>, vector<1x8x128xf32>
    %7 = vector.shape_cast %6 : vector<1x8x128xf32> to vector<8x128xf32>
    %c2 = arith.constant 2 : index
    %c0_12 = arith.constant 0 : index
    %c0_13 = arith.constant 0 : index
    %8 = vector.load %arg4[%c2, %c0_12, %c0_13] : memref<12x8x128xf32, #tpu.memory_space<vmem>>, vector<1x8x128xf32>
    %9 = vector.shape_cast %8 : vector<1x8x128xf32> to vector<8x128xf32>
    %c3 = arith.constant 3 : index
    %c0_14 = arith.constant 0 : index
    %c0_15 = arith.constant 0 : index
    %10 = vector.load %arg4[%c3, %c0_14, %c0_15] : memref<12x8x128xf32, #tpu.memory_space<vmem>>, vector<1x8x128xf32>
    %11 = vector.shape_cast %10 : vector<1x8x128xf32> to vector<8x128xf32>
    %c4 = arith.constant 4 : index
    %c0_16 = arith.constant 0 : index
    %c0_17 = arith.constant 0 : index
    %12 = vector.load %arg4[%c4, %c0_16, %c0_17] : memref<12x8x128xf32, #tpu.memory_space<vmem>>, vector<1x8x128xf32>
    %13 = vector.shape_cast %12 : vector<1x8x128xf32> to vector<8x128xf32>
    %c5 = arith.constant 5 : index
    %c0_18 = arith.constant 0 : index
    %c0_19 = arith.constant 0 : index
    %14 = vector.load %arg4[%c5, %c0_18, %c0_19] : memref<12x8x128xf32, #tpu.memory_space<vmem>>, vector<1x8x128xf32>
    %15 = vector.shape_cast %14 : vector<1x8x128xf32> to vector<8x128xf32>
    %c6 = arith.constant 6 : index
    %c0_20 = arith.constant 0 : index
    %c0_21 = arith.constant 0 : index
    %16 = vector.load %arg4[%c6, %c0_20, %c0_21] : memref<12x8x128xf32, #tpu.memory_space<vmem>>, vector<1x8x128xf32>
    %17 = vector.shape_cast %16 : vector<1x8x128xf32> to vector<8x128xf32>
    %c7 = arith.constant 7 : index
    %c0_22 = arith.constant 0 : index
    %c0_23 = arith.constant 0 : index
    %18 = vector.load %arg4[%c7, %c0_22, %c0_23] : memref<12x8x128xf32, #tpu.memory_space<vmem>>, vector<1x8x128xf32>
    %19 = vector.shape_cast %18 : vector<1x8x128xf32> to vector<8x128xf32>
    %c8 = arith.constant 8 : index
    %c0_24 = arith.constant 0 : index
    %c0_25 = arith.constant 0 : index
    %20 = vector.load %arg4[%c8, %c0_24, %c0_25] : memref<12x8x128xf32, #tpu.memory_space<vmem>>, vector<1x8x128xf32>
    %21 = vector.shape_cast %20 : vector<1x8x128xf32> to vector<8x128xf32>
    %c9 = arith.constant 9 : index
    %c0_26 = arith.constant 0 : index
    %c0_27 = arith.constant 0 : index
    %22 = vector.load %arg4[%c9, %c0_26, %c0_27] : memref<12x8x128xf32, #tpu.memory_space<vmem>>, vector<1x8x128xf32>
    %23 = vector.shape_cast %22 : vector<1x8x128xf32> to vector<8x128xf32>
    %c10 = arith.constant 10 : index
    %c0_28 = arith.constant 0 : index
    %c0_29 = arith.constant 0 : index
    %24 = vector.load %arg4[%c10, %c0_28, %c0_29] : memref<12x8x128xf32, #tpu.memory_space<vmem>>, vector<1x8x128xf32>
    %25 = vector.shape_cast %24 : vector<1x8x128xf32> to vector<8x128xf32>
    %c11 = arith.constant 11 : index
    %c0_30 = arith.constant 0 : index
    %c0_31 = arith.constant 0 : index
    %26 = vector.load %arg4[%c11, %c0_30, %c0_31] : memref<12x8x128xf32, #tpu.memory_space<vmem>>, vector<1x8x128xf32>
    %27 = vector.shape_cast %26 : vector<1x8x128xf32> to vector<8x128xf32>
    %cst = arith.constant 5.000000e-01 : f32
    %28 = vector.broadcast %cst : f32 to vector<8x128xf32>
    %29 = arith.cmpf ogt, %27, %28 : vector<8x128xf32>
    %30 = tpu.iota {dimensions = array<i32: 0>} : vector<8x128xi32>
    %c128_i32 = arith.constant 128 : i32
    %31 = vector.broadcast %c128_i32 : i32 to vector<8x128xi32>
    %32 = arith.muli %30, %31 : vector<8x128xi32>
    %33 = tpu.iota {dimensions = array<i32: 1>} : vector<8x128xi32>
    %34 = arith.addi %32, %33 : vector<8x128xi32>
    %35 = arith.sitofp %34 : vector<8x128xi32> to vector<8x128xf32>
    %cst_32 = arith.constant 0.000000e+00 : f32
    %36 = vector.broadcast %cst_32 : f32 to vector<8x128xf32>
    %cst_33 = arith.constant -2.000000e+00 : f32
    %37 = vector.broadcast %cst_33 : f32 to vector<8x128xf32>
    %c0_i32 = arith.constant 0 : i32
    %c3_i32 = arith.constant 3 : i32
    %38 = arith.addi %c0_i32, %c3_i32 : i32
    %c1_i32 = arith.constant 1 : i32
    %39:7 = scf.for %arg6 = %c0_i32 to %38 step %c1_i32 iter_args(%arg7 = %37, %arg8 = %36, %arg9 = %36, %arg10 = %36, %arg11 = %36, %arg12 = %36, %arg13 = %36) -> (vector<8x128xf32>, vector<8x128xf32>, vector<8x128xf32>, vector<8x128xf32>, vector<8x128xf32>, vector<8x128xf32>, vector<8x128xf32>)  : i32 {
      %c5_i32_112 = arith.constant 5 : i32
      %466 = arith.muli %arg6, %c5_i32_112 : i32
      %c0_i32_113 = arith.constant 0 : i32
      %467 = arith.addi %466, %c0_i32_113 : i32
      %468 = arith.index_cast %arg0 : i32 to index
      %469 = arith.index_cast %467 : i32 to index
      %470 = memref.load %arg1[%468, %469] : memref<2x15xf32, #tpu.memory_space<smem>>
      %c1_i32_114 = arith.constant 1 : i32
      %471 = arith.addi %466, %c1_i32_114 : i32
      %472 = arith.index_cast %arg0 : i32 to index
      %473 = arith.index_cast %471 : i32 to index
      %474 = memref.load %arg1[%472, %473] : memref<2x15xf32, #tpu.memory_space<smem>>
      %c2_i32_115 = arith.constant 2 : i32
      %475 = arith.addi %466, %c2_i32_115 : i32
      %476 = arith.index_cast %arg0 : i32 to index
      %477 = arith.index_cast %475 : i32 to index
      %478 = memref.load %arg1[%476, %477] : memref<2x15xf32, #tpu.memory_space<smem>>
      %c3_i32_116 = arith.constant 3 : i32
      %479 = arith.addi %466, %c3_i32_116 : i32
      %480 = arith.index_cast %arg0 : i32 to index
      %481 = arith.index_cast %479 : i32 to index
      %482 = memref.load %arg1[%480, %481] : memref<2x15xf32, #tpu.memory_space<smem>>
      %c4_i32_117 = arith.constant 4 : i32
      %483 = arith.addi %466, %c4_i32_117 : i32
      %484 = arith.index_cast %arg0 : i32 to index
      %485 = arith.index_cast %483 : i32 to index
      %486 = memref.load %arg1[%484, %485] : memref<2x15xf32, #tpu.memory_space<smem>>
      %487 = arith.subf %478, %470 : f32
      %488 = arith.subf %482, %474 : f32
      %489 = arith.mulf %487, %488 : f32
      %490 = vector.broadcast %470 : f32 to vector<8x128xf32>
      %491 = arith.maximumf %5, %490 : vector<8x128xf32>
      %492 = vector.broadcast %474 : f32 to vector<8x128xf32>
      %493 = arith.maximumf %7, %492 : vector<8x128xf32>
      %494 = vector.broadcast %478 : f32 to vector<8x128xf32>
      %495 = arith.minimumf %9, %494 : vector<8x128xf32>
      %496 = vector.broadcast %482 : f32 to vector<8x128xf32>
      %497 = arith.minimumf %11, %496 : vector<8x128xf32>
      %498 = arith.subf %495, %491 : vector<8x128xf32>
      %cst_118 = arith.constant 0.000000e+00 : f32
      %499 = vector.broadcast %cst_118 : f32 to vector<8x128xf32>
      %500 = arith.maximumf %498, %499 : vector<8x128xf32>
      %501 = arith.subf %497, %493 : vector<8x128xf32>
      %cst_119 = arith.constant 0.000000e+00 : f32
      %502 = vector.broadcast %cst_119 : f32 to vector<8x128xf32>
      %503 = arith.maximumf %501, %502 : vector<8x128xf32>
      %504 = arith.mulf %500, %503 : vector<8x128xf32>
      %505 = vector.broadcast %489 : f32 to vector<8x128xf32>
      %506 = arith.addf %13, %505 : vector<8x128xf32>
      %507 = arith.subf %506, %504 : vector<8x128xf32>
      %cst_120 = arith.constant 1.000000e-10 : f32
      %508 = vector.broadcast %cst_120 : f32 to vector<8x128xf32>
      %509 = arith.maximumf %507, %508 : vector<8x128xf32>
      %510 = arith.divf %504, %509 : vector<8x128xf32>
      %cst_121 = arith.constant -1.000000e+00 : f32
      %511 = vector.broadcast %cst_121 : f32 to vector<8x128xf32>
      %512 = arith.select %29, %510, %511 : vector<8x128xi1>, vector<8x128xf32>
      %513 = vector.shape_cast %512 : vector<8x128xf32> to vector<1x8x128xf32>
      %cst_122 = arith.constant dense<0xFF800000> : vector<1xf32>
      %514 = vector.multi_reduction <maximumf>, %513, %cst_122 [1, 2] : vector<1x8x128xf32> to vector<1xf32>
      %515 = vector.shape_cast %514 : vector<1xf32> to vector<1x1x1xf32>
      %516 = vector.extract %515[0, 0, 0] : f32 from vector<1x1x1xf32>
      %517 = vector.broadcast %516 : f32 to vector<8x128xf32>
      %518 = arith.cmpf oeq, %512, %517 : vector<8x128xf32>
      %cst_123 = arith.constant 1.000000e+09 : f32
      %519 = vector.broadcast %cst_123 : f32 to vector<8x128xf32>
      %520 = arith.select %518, %35, %519 : vector<8x128xi1>, vector<8x128xf32>
      %521 = vector.shape_cast %520 : vector<8x128xf32> to vector<1x8x128xf32>
      %cst_124 = arith.constant dense<0x7F800000> : vector<1xf32>
      %522 = vector.multi_reduction <minimumf>, %521, %cst_124 [1, 2] : vector<1x8x128xf32> to vector<1xf32>
      %523 = vector.shape_cast %522 : vector<1xf32> to vector<1x1x1xf32>
      %524 = vector.extract %523[0, 0, 0] : f32 from vector<1x1x1xf32>
      %525 = vector.broadcast %524 : f32 to vector<8x128xf32>
      %526 = arith.cmpf oeq, %35, %525 : vector<8x128xf32>
      %cst_125 = arith.constant 1.000000e+00 : f32
      %527 = vector.broadcast %cst_125 : f32 to vector<8x128xf32>
      %528 = arith.select %526, %527, %512 : vector<8x128xi1>, vector<8x128xf32>
      %529 = arith.cmpf ogt, %528, %arg7 : vector<8x128xf32>
      %530 = arith.select %529, %528, %arg7 : vector<8x128xi1>, vector<8x128xf32>
      %531 = vector.broadcast %470 : f32 to vector<8x128xf32>
      %532 = arith.select %529, %531, %arg8 : vector<8x128xi1>, vector<8x128xf32>
      %533 = vector.broadcast %474 : f32 to vector<8x128xf32>
      %534 = arith.select %529, %533, %arg9 : vector<8x128xi1>, vector<8x128xf32>
      %535 = vector.broadcast %478 : f32 to vector<8x128xf32>
      %536 = arith.select %529, %535, %arg10 : vector<8x128xi1>, vector<8x128xf32>
      %537 = vector.broadcast %482 : f32 to vector<8x128xf32>
      %538 = arith.select %529, %537, %arg11 : vector<8x128xi1>, vector<8x128xf32>
      %539 = vector.broadcast %486 : f32 to vector<8x128xf32>
      %540 = arith.select %529, %539, %arg12 : vector<8x128xi1>, vector<8x128xf32>
      %cst_126 = arith.constant 5.000000e-01 : f32
      %541 = vector.broadcast %cst_126 : f32 to vector<8x128xf32>
      %542 = arith.cmpf oge, %528, %541 : vector<8x128xf32>
      %543 = arith.extui %542 : vector<8x128xi1> to vector<8x128xi32>
      %544 = arith.sitofp %543 : vector<8x128xi32> to vector<8x128xf32>
      %545 = arith.maximumf %arg13, %544 : vector<8x128xf32>
      scf.yield %530, %532, %534, %536, %538, %540, %545 : vector<8x128xf32>, vector<8x128xf32>, vector<8x128xf32>, vector<8x128xf32>, vector<8x128xf32>, vector<8x128xf32>, vector<8x128xf32>
    }
    %c3_i32_34 = arith.constant 3 : i32
    %40 = vector.shape_cast %39#6 : vector<8x128xf32> to vector<1x8x128xf32>
    %cst_35 = arith.constant dense<0.000000e+00> : vector<1xf32>
    %41 = vector.multi_reduction <add>, %40, %cst_35 [1, 2] : vector<1x8x128xf32> to vector<1xf32>
    %42 = vector.shape_cast %41 : vector<1xf32> to vector<1x1x1xf32>
    %43 = vector.extract %42[0, 0, 0] : f32 from vector<1x1x1xf32>
    %44 = arith.fptosi %39#5 : vector<8x128xf32> to vector<8x128xi32>
    %c1_i32_36 = arith.constant 1 : i32
    %45 = vector.broadcast %c1_i32_36 : i32 to vector<8x128xi32>
    %46 = arith.addi %44, %45 : vector<8x128xi32>
    %47 = arith.fptosi %39#6 : vector<8x128xf32> to vector<8x128xi32>
    %48 = arith.muli %46, %47 : vector<8x128xi32>
    %49 = arith.addf %39#1, %39#3 : vector<8x128xf32>
    %cst_37 = arith.constant 5.000000e-01 : f32
    %50 = vector.broadcast %cst_37 : f32 to vector<8x128xf32>
    %51 = arith.mulf %49, %50 : vector<8x128xf32>
    %52 = arith.addf %39#2, %39#4 : vector<8x128xf32>
    %cst_38 = arith.constant 5.000000e-01 : f32
    %53 = vector.broadcast %cst_38 : f32 to vector<8x128xf32>
    %54 = arith.mulf %52, %53 : vector<8x128xf32>
    %55 = arith.subf %51, %15 : vector<8x128xf32>
    %56 = arith.mulf %55, %19 : vector<8x128xf32>
    %57 = arith.subf %54, %17 : vector<8x128xf32>
    %58 = arith.mulf %57, %21 : vector<8x128xf32>
    %59 = arith.subf %39#3, %39#1 : vector<8x128xf32>
    %cst_39 = arith.constant 9.99999996E-13 : f32
    %60 = vector.broadcast %cst_39 : f32 to vector<8x128xf32>
    %61 = arith.maximumf %59, %60 : vector<8x128xf32>
    %62 = math.log %61 : vector<8x128xf32>
    %63 = arith.subf %62, %23 : vector<8x128xf32>
    %cst_40 = arith.constant 5.000000e+00 : f32
    %64 = vector.broadcast %cst_40 : f32 to vector<8x128xf32>
    %65 = arith.mulf %63, %64 : vector<8x128xf32>
    %66 = arith.subf %39#4, %39#2 : vector<8x128xf32>
    %cst_41 = arith.constant 9.99999996E-13 : f32
    %67 = vector.broadcast %cst_41 : f32 to vector<8x128xf32>
    %68 = arith.maximumf %66, %67 : vector<8x128xf32>
    %69 = math.log %68 : vector<8x128xf32>
    %70 = arith.subf %69, %25 : vector<8x128xf32>
    %cst_42 = arith.constant 5.000000e+00 : f32
    %71 = vector.broadcast %cst_42 : f32 to vector<8x128xf32>
    %72 = arith.mulf %70, %71 : vector<8x128xf32>
    %cst_43 = arith.constant dense<0xFF800000> : vector<8x128xf32>
    %73 = vector.multi_reduction <maximumf>, %1, %cst_43 [0] : vector<8x8x128xf32> to vector<8x128xf32>
    %74 = vector.shape_cast %73 : vector<8x128xf32> to vector<1x8x128xf32>
    %75 = vector.broadcast %74 : vector<1x8x128xf32> to vector<8x8x128xf32>
    %76 = arith.subf %1, %75 : vector<8x8x128xf32>
    %77 = math.exp %76 : vector<8x8x128xf32>
    %cst_44 = arith.constant dense<0.000000e+00> : vector<8x128xf32>
    %78 = vector.multi_reduction <add>, %77, %cst_44 [0] : vector<8x8x128xf32> to vector<8x128xf32>
    %79 = math.log %78 : vector<8x128xf32>
    %80 = arith.addf %79, %73 : vector<8x128xf32>
    %cst_45 = arith.constant 0.000000e+00 : f32
    %81 = vector.broadcast %cst_45 : f32 to vector<8x128xf32>
    %c0_i32_46 = arith.constant 0 : i32
    %82 = vector.broadcast %c0_i32_46 : i32 to vector<8x128xi32>
    %83 = arith.cmpi eq, %48, %82 : vector<8x128xi32>
    %84 = vector.extract_strided_slice %1 {offsets = [0, 0, 0], sizes = [1, 8, 128], strides = [1, 1, 1]} : vector<8x8x128xf32> to vector<1x8x128xf32>
    %85 = vector.shape_cast %84 : vector<1x8x128xf32> to vector<8x128xf32>
    %cst_47 = arith.constant 0.000000e+00 : f32
    %86 = vector.broadcast %cst_47 : f32 to vector<8x128xf32>
    %87 = arith.select %83, %85, %86 : vector<8x128xi1>, vector<8x128xf32>
    %88 = arith.addf %81, %87 : vector<8x128xf32>
    %c1_i32_48 = arith.constant 1 : i32
    %89 = vector.broadcast %c1_i32_48 : i32 to vector<8x128xi32>
    %90 = arith.cmpi eq, %48, %89 : vector<8x128xi32>
    %91 = vector.extract_strided_slice %1 {offsets = [1, 0, 0], sizes = [1, 8, 128], strides = [1, 1, 1]} : vector<8x8x128xf32> to vector<1x8x128xf32>
    %92 = vector.shape_cast %91 : vector<1x8x128xf32> to vector<8x128xf32>
    %cst_49 = arith.constant 0.000000e+00 : f32
    %93 = vector.broadcast %cst_49 : f32 to vector<8x128xf32>
    %94 = arith.select %90, %92, %93 : vector<8x128xi1>, vector<8x128xf32>
    %95 = arith.addf %88, %94 : vector<8x128xf32>
    %c2_i32 = arith.constant 2 : i32
    %96 = vector.broadcast %c2_i32 : i32 to vector<8x128xi32>
    %97 = arith.cmpi eq, %48, %96 : vector<8x128xi32>
    %98 = vector.extract_strided_slice %1 {offsets = [2, 0, 0], sizes = [1, 8, 128], strides = [1, 1, 1]} : vector<8x8x128xf32> to vector<1x8x128xf32>
    %99 = vector.shape_cast %98 : vector<1x8x128xf32> to vector<8x128xf32>
    %cst_50 = arith.constant 0.000000e+00 : f32
    %100 = vector.broadcast %cst_50 : f32 to vector<8x128xf32>
    %101 = arith.select %97, %99, %100 : vector<8x128xi1>, vector<8x128xf32>
    %102 = arith.addf %95, %101 : vector<8x128xf32>
    %c3_i32_51 = arith.constant 3 : i32
    %103 = vector.broadcast %c3_i32_51 : i32 to vector<8x128xi32>
    %104 = arith.cmpi eq, %48, %103 : vector<8x128xi32>
    %105 = vector.extract_strided_slice %1 {offsets = [3, 0, 0], sizes = [1, 8, 128], strides = [1, 1, 1]} : vector<8x8x128xf32> to vector<1x8x128xf32>
    %106 = vector.shape_cast %105 : vector<1x8x128xf32> to vector<8x128xf32>
    %cst_52 = arith.constant 0.000000e+00 : f32
    %107 = vector.broadcast %cst_52 : f32 to vector<8x128xf32>
    %108 = arith.select %104, %106, %107 : vector<8x128xi1>, vector<8x128xf32>
    %109 = arith.addf %102, %108 : vector<8x128xf32>
    %c4_i32 = arith.constant 4 : i32
    %110 = vector.broadcast %c4_i32 : i32 to vector<8x128xi32>
    %111 = arith.cmpi eq, %48, %110 : vector<8x128xi32>
    %112 = vector.extract_strided_slice %1 {offsets = [4, 0, 0], sizes = [1, 8, 128], strides = [1, 1, 1]} : vector<8x8x128xf32> to vector<1x8x128xf32>
    %113 = vector.shape_cast %112 : vector<1x8x128xf32> to vector<8x128xf32>
    %cst_53 = arith.constant 0.000000e+00 : f32
    %114 = vector.broadcast %cst_53 : f32 to vector<8x128xf32>
    %115 = arith.select %111, %113, %114 : vector<8x128xi1>, vector<8x128xf32>
    %116 = arith.addf %109, %115 : vector<8x128xf32>
    %c5_i32 = arith.constant 5 : i32
    %117 = vector.broadcast %c5_i32 : i32 to vector<8x128xi32>
    %118 = arith.cmpi eq, %48, %117 : vector<8x128xi32>
    %119 = vector.extract_strided_slice %1 {offsets = [5, 0, 0], sizes = [1, 8, 128], strides = [1, 1, 1]} : vector<8x8x128xf32> to vector<1x8x128xf32>
    %120 = vector.shape_cast %119 : vector<1x8x128xf32> to vector<8x128xf32>
    %cst_54 = arith.constant 0.000000e+00 : f32
    %121 = vector.broadcast %cst_54 : f32 to vector<8x128xf32>
    %122 = arith.select %118, %120, %121 : vector<8x128xi1>, vector<8x128xf32>
    %123 = arith.addf %116, %122 : vector<8x128xf32>
    %c6_i32 = arith.constant 6 : i32
    %124 = vector.broadcast %c6_i32 : i32 to vector<8x128xi32>
    %125 = arith.cmpi eq, %48, %124 : vector<8x128xi32>
    %126 = vector.extract_strided_slice %1 {offsets = [6, 0, 0], sizes = [1, 8, 128], strides = [1, 1, 1]} : vector<8x8x128xf32> to vector<1x8x128xf32>
    %127 = vector.shape_cast %126 : vector<1x8x128xf32> to vector<8x128xf32>
    %cst_55 = arith.constant 0.000000e+00 : f32
    %128 = vector.broadcast %cst_55 : f32 to vector<8x128xf32>
    %129 = arith.select %125, %127, %128 : vector<8x128xi1>, vector<8x128xf32>
    %130 = arith.addf %123, %129 : vector<8x128xf32>
    %c7_i32 = arith.constant 7 : i32
    %131 = vector.broadcast %c7_i32 : i32 to vector<8x128xi32>
    %132 = arith.cmpi eq, %48, %131 : vector<8x128xi32>
    %133 = vector.extract_strided_slice %1 {offsets = [7, 0, 0], sizes = [1, 8, 128], strides = [1, 1, 1]} : vector<8x8x128xf32> to vector<1x8x128xf32>
    %134 = vector.shape_cast %133 : vector<1x8x128xf32> to vector<8x128xf32>
    %cst_56 = arith.constant 0.000000e+00 : f32
    %135 = vector.broadcast %cst_56 : f32 to vector<8x128xf32>
    %136 = arith.select %132, %134, %135 : vector<8x128xi1>, vector<8x128xf32>
    %137 = arith.addf %130, %136 : vector<8x128xf32>
    %138 = arith.subf %80, %137 : vector<8x128xf32>
    %139 = arith.mulf %138, %27 : vector<8x128xf32>
    %140 = arith.mulf %139, %39#6 : vector<8x128xf32>
    %141 = vector.shape_cast %140 : vector<8x128xf32> to vector<1x8x128xf32>
    %cst_57 = arith.constant dense<0.000000e+00> : vector<1xf32>
    %142 = vector.multi_reduction <add>, %141, %cst_57 [1, 2] : vector<1x8x128xf32> to vector<1xf32>
    %143 = vector.shape_cast %142 : vector<1xf32> to vector<1x1x1xf32>
    %144 = vector.extract %143[0, 0, 0] : f32 from vector<1x1x1xf32>
    %cst_58 = arith.constant 1.000000e+00 : f32
    %145 = vector.broadcast %cst_58 : f32 to vector<8x128xf32>
    %146 = arith.subf %145, %39#6 : vector<8x128xf32>
    %147 = arith.mulf %139, %146 : vector<8x128xf32>
    %cst_59 = arith.constant 3.000000e+00 : f32
    %148 = arith.mulf %cst_59, %43 : f32
    %149 = tpu.iota {dimensions = array<i32: 0>} : vector<8x128xi32>
    %150 = arith.sitofp %149 : vector<8x128xi32> to vector<8x128xf32>
    %cst_60 = arith.constant 1.000000e+00 : f32
    %151 = vector.broadcast %cst_60 : f32 to vector<8x128xf32>
    %152 = arith.addf %150, %151 : vector<8x128xf32>
    %cst_61 = arith.constant 0.111111112 : f32
    %153 = vector.broadcast %cst_61 : f32 to vector<8x128xf32>
    %154 = arith.mulf %152, %153 : vector<8x128xf32>
    %155 = vector.shape_cast %147 : vector<8x128xf32> to vector<1x8x128xf32>
    %cst_62 = arith.constant dense<0xFF800000> : vector<1xf32>
    %156 = vector.multi_reduction <maximumf>, %155, %cst_62 [1, 2] : vector<1x8x128xf32> to vector<1xf32>
    %157 = vector.shape_cast %156 : vector<1xf32> to vector<1x1x1xf32>
    %158 = vector.extract %157[0, 0, 0] : f32 from vector<1x1x1xf32>
    %cst_63 = arith.constant 0.000000e+00 : f32
    %159 = arith.subf %158, %cst_63 : f32
    %160 = vector.broadcast %159 : f32 to vector<8x128xf32>
    %161 = arith.mulf %160, %154 : vector<8x128xf32>
    %cst_64 = arith.constant 0.000000e+00 : f32
    %162 = vector.broadcast %cst_64 : f32 to vector<8x128xf32>
    %163 = arith.addf %162, %161 : vector<8x128xf32>
    %164 = vector.shape_cast %147 : vector<8x128xf32> to vector<1x8x128xf32>
    %165 = vector.shape_cast %163 : vector<8x128xf32> to vector<8x1x128xf32>
    %166 = vector.broadcast %164 : vector<1x8x128xf32> to vector<8x8x128xf32>
    %167 = vector.broadcast %165 : vector<8x1x128xf32> to vector<8x8x128xf32>
    %168 = arith.cmpf ogt, %166, %167 : vector<8x8x128xf32>
    %169 = arith.extui %168 : vector<8x8x128xi1> to vector<8x8x128xi32>
    %170 = arith.sitofp %169 : vector<8x8x128xi32> to vector<8x8x128xf32>
    %cst_65 = arith.constant dense<0.000000e+00> : vector<8x8xf32>
    %171 = vector.multi_reduction <add>, %170, %cst_65 [2] : vector<8x8x128xf32> to vector<8x8xf32>
    %cst_66 = arith.constant dense<0.000000e+00> : vector<8xf32>
    %172 = vector.multi_reduction <add>, %171, %cst_66 [1] : vector<8x8xf32> to vector<8xf32>
    %173 = vector.shape_cast %172 : vector<8xf32> to vector<8x1xf32>
    %174 = vector.broadcast %148 : f32 to vector<8x1xf32>
    %175 = arith.cmpf oge, %173, %174 : vector<8x1xf32>
    %176 = vector.extract_strided_slice %163 {offsets = [0, 0], sizes = [8, 1], strides = [1, 1]} : vector<8x128xf32> to vector<8x1xf32>
    %cst_67 = arith.constant 0.000000e+00 : f32
    %177 = vector.broadcast %cst_67 : f32 to vector<8x1xf32>
    %178 = arith.select %175, %176, %177 : vector<8x1xi1>, vector<8x1xf32>
    %179 = vector.shape_cast %178 : vector<8x1xf32> to vector<1x8x1xf32>
    %cst_68 = arith.constant dense<0xFF800000> : vector<1xf32>
    %180 = vector.multi_reduction <maximumf>, %179, %cst_68 [1, 2] : vector<1x8x1xf32> to vector<1xf32>
    %181 = vector.shape_cast %180 : vector<1xf32> to vector<1x1x1xf32>
    %182 = vector.extract %181[0, 0, 0] : f32 from vector<1x1x1xf32>
    %183 = vector.extract_strided_slice %163 {offsets = [0, 0], sizes = [8, 1], strides = [1, 1]} : vector<8x128xf32> to vector<8x1xf32>
    %184 = vector.broadcast %158 : f32 to vector<8x1xf32>
    %185 = arith.select %175, %184, %183 : vector<8x1xi1>, vector<8x1xf32>
    %186 = vector.shape_cast %185 : vector<8x1xf32> to vector<1x8x1xf32>
    %cst_69 = arith.constant dense<0x7F800000> : vector<1xf32>
    %187 = vector.multi_reduction <minimumf>, %186, %cst_69 [1, 2] : vector<1x8x1xf32> to vector<1xf32>
    %188 = vector.shape_cast %187 : vector<1xf32> to vector<1x1x1xf32>
    %189 = vector.extract %188[0, 0, 0] : f32 from vector<1x1x1xf32>
    %190 = arith.subf %189, %182 : f32
    %191 = vector.broadcast %190 : f32 to vector<8x128xf32>
    %192 = arith.mulf %191, %154 : vector<8x128xf32>
    %193 = vector.broadcast %182 : f32 to vector<8x128xf32>
    %194 = arith.addf %193, %192 : vector<8x128xf32>
    %195 = vector.shape_cast %147 : vector<8x128xf32> to vector<1x8x128xf32>
    %196 = vector.shape_cast %194 : vector<8x128xf32> to vector<8x1x128xf32>
    %197 = vector.broadcast %195 : vector<1x8x128xf32> to vector<8x8x128xf32>
    %198 = vector.broadcast %196 : vector<8x1x128xf32> to vector<8x8x128xf32>
    %199 = arith.cmpf ogt, %197, %198 : vector<8x8x128xf32>
    %200 = arith.extui %199 : vector<8x8x128xi1> to vector<8x8x128xi32>
    %201 = arith.sitofp %200 : vector<8x8x128xi32> to vector<8x8x128xf32>
    %cst_70 = arith.constant dense<0.000000e+00> : vector<8x8xf32>
    %202 = vector.multi_reduction <add>, %201, %cst_70 [2] : vector<8x8x128xf32> to vector<8x8xf32>
    %cst_71 = arith.constant dense<0.000000e+00> : vector<8xf32>
    %203 = vector.multi_reduction <add>, %202, %cst_71 [1] : vector<8x8xf32> to vector<8xf32>
    %204 = vector.shape_cast %203 : vector<8xf32> to vector<8x1xf32>
    %205 = vector.broadcast %148 : f32 to vector<8x1xf32>
    %206 = arith.cmpf oge, %204, %205 : vector<8x1xf32>
    %207 = vector.extract_strided_slice %194 {offsets = [0, 0], sizes = [8, 1], strides = [1, 1]} : vector<8x128xf32> to vector<8x1xf32>
    %208 = vector.broadcast %182 : f32 to vector<8x1xf32>
    %209 = arith.select %206, %207, %208 : vector<8x1xi1>, vector<8x1xf32>
    %210 = vector.shape_cast %209 : vector<8x1xf32> to vector<1x8x1xf32>
    %cst_72 = arith.constant dense<0xFF800000> : vector<1xf32>
    %211 = vector.multi_reduction <maximumf>, %210, %cst_72 [1, 2] : vector<1x8x1xf32> to vector<1xf32>
    %212 = vector.shape_cast %211 : vector<1xf32> to vector<1x1x1xf32>
    %213 = vector.extract %212[0, 0, 0] : f32 from vector<1x1x1xf32>
    %214 = vector.extract_strided_slice %194 {offsets = [0, 0], sizes = [8, 1], strides = [1, 1]} : vector<8x128xf32> to vector<8x1xf32>
    %215 = vector.broadcast %189 : f32 to vector<8x1xf32>
    %216 = arith.select %206, %215, %214 : vector<8x1xi1>, vector<8x1xf32>
    %217 = vector.shape_cast %216 : vector<8x1xf32> to vector<1x8x1xf32>
    %cst_73 = arith.constant dense<0x7F800000> : vector<1xf32>
    %218 = vector.multi_reduction <minimumf>, %217, %cst_73 [1, 2] : vector<1x8x1xf32> to vector<1xf32>
    %219 = vector.shape_cast %218 : vector<1xf32> to vector<1x1x1xf32>
    %220 = vector.extract %219[0, 0, 0] : f32 from vector<1x1x1xf32>
    %221 = arith.subf %220, %213 : f32
    %222 = vector.broadcast %221 : f32 to vector<8x128xf32>
    %223 = arith.mulf %222, %154 : vector<8x128xf32>
    %224 = vector.broadcast %213 : f32 to vector<8x128xf32>
    %225 = arith.addf %224, %223 : vector<8x128xf32>
    %226 = vector.shape_cast %147 : vector<8x128xf32> to vector<1x8x128xf32>
    %227 = vector.shape_cast %225 : vector<8x128xf32> to vector<8x1x128xf32>
    %228 = vector.broadcast %226 : vector<1x8x128xf32> to vector<8x8x128xf32>
    %229 = vector.broadcast %227 : vector<8x1x128xf32> to vector<8x8x128xf32>
    %230 = arith.cmpf ogt, %228, %229 : vector<8x8x128xf32>
    %231 = arith.extui %230 : vector<8x8x128xi1> to vector<8x8x128xi32>
    %232 = arith.sitofp %231 : vector<8x8x128xi32> to vector<8x8x128xf32>
    %cst_74 = arith.constant dense<0.000000e+00> : vector<8x8xf32>
    %233 = vector.multi_reduction <add>, %232, %cst_74 [2] : vector<8x8x128xf32> to vector<8x8xf32>
    %cst_75 = arith.constant dense<0.000000e+00> : vector<8xf32>
    %234 = vector.multi_reduction <add>, %233, %cst_75 [1] : vector<8x8xf32> to vector<8xf32>
    %235 = vector.shape_cast %234 : vector<8xf32> to vector<8x1xf32>
    %236 = vector.broadcast %148 : f32 to vector<8x1xf32>
    %237 = arith.cmpf oge, %235, %236 : vector<8x1xf32>
    %238 = vector.extract_strided_slice %225 {offsets = [0, 0], sizes = [8, 1], strides = [1, 1]} : vector<8x128xf32> to vector<8x1xf32>
    %239 = vector.broadcast %213 : f32 to vector<8x1xf32>
    %240 = arith.select %237, %238, %239 : vector<8x1xi1>, vector<8x1xf32>
    %241 = vector.shape_cast %240 : vector<8x1xf32> to vector<1x8x1xf32>
    %cst_76 = arith.constant dense<0xFF800000> : vector<1xf32>
    %242 = vector.multi_reduction <maximumf>, %241, %cst_76 [1, 2] : vector<1x8x1xf32> to vector<1xf32>
    %243 = vector.shape_cast %242 : vector<1xf32> to vector<1x1x1xf32>
    %244 = vector.extract %243[0, 0, 0] : f32 from vector<1x1x1xf32>
    %245 = vector.extract_strided_slice %225 {offsets = [0, 0], sizes = [8, 1], strides = [1, 1]} : vector<8x128xf32> to vector<8x1xf32>
    %246 = vector.broadcast %220 : f32 to vector<8x1xf32>
    %247 = arith.select %237, %246, %245 : vector<8x1xi1>, vector<8x1xf32>
    %248 = vector.shape_cast %247 : vector<8x1xf32> to vector<1x8x1xf32>
    %cst_77 = arith.constant dense<0x7F800000> : vector<1xf32>
    %249 = vector.multi_reduction <minimumf>, %248, %cst_77 [1, 2] : vector<1x8x1xf32> to vector<1xf32>
    %250 = vector.shape_cast %249 : vector<1xf32> to vector<1x1x1xf32>
    %251 = vector.extract %250[0, 0, 0] : f32 from vector<1x1x1xf32>
    %252 = arith.subf %251, %244 : f32
    %253 = vector.broadcast %252 : f32 to vector<8x128xf32>
    %254 = arith.mulf %253, %154 : vector<8x128xf32>
    %255 = vector.broadcast %244 : f32 to vector<8x128xf32>
    %256 = arith.addf %255, %254 : vector<8x128xf32>
    %257 = vector.shape_cast %147 : vector<8x128xf32> to vector<1x8x128xf32>
    %258 = vector.shape_cast %256 : vector<8x128xf32> to vector<8x1x128xf32>
    %259 = vector.broadcast %257 : vector<1x8x128xf32> to vector<8x8x128xf32>
    %260 = vector.broadcast %258 : vector<8x1x128xf32> to vector<8x8x128xf32>
    %261 = arith.cmpf ogt, %259, %260 : vector<8x8x128xf32>
    %262 = arith.extui %261 : vector<8x8x128xi1> to vector<8x8x128xi32>
    %263 = arith.sitofp %262 : vector<8x8x128xi32> to vector<8x8x128xf32>
    %cst_78 = arith.constant dense<0.000000e+00> : vector<8x8xf32>
    %264 = vector.multi_reduction <add>, %263, %cst_78 [2] : vector<8x8x128xf32> to vector<8x8xf32>
    %cst_79 = arith.constant dense<0.000000e+00> : vector<8xf32>
    %265 = vector.multi_reduction <add>, %264, %cst_79 [1] : vector<8x8xf32> to vector<8xf32>
    %266 = vector.shape_cast %265 : vector<8xf32> to vector<8x1xf32>
    %267 = vector.broadcast %148 : f32 to vector<8x1xf32>
    %268 = arith.cmpf oge, %266, %267 : vector<8x1xf32>
    %269 = vector.extract_strided_slice %256 {offsets = [0, 0], sizes = [8, 1], strides = [1, 1]} : vector<8x128xf32> to vector<8x1xf32>
    %270 = vector.broadcast %244 : f32 to vector<8x1xf32>
    %271 = arith.select %268, %269, %270 : vector<8x1xi1>, vector<8x1xf32>
    %272 = vector.shape_cast %271 : vector<8x1xf32> to vector<1x8x1xf32>
    %cst_80 = arith.constant dense<0xFF800000> : vector<1xf32>
    %273 = vector.multi_reduction <maximumf>, %272, %cst_80 [1, 2] : vector<1x8x1xf32> to vector<1xf32>
    %274 = vector.shape_cast %273 : vector<1xf32> to vector<1x1x1xf32>
    %275 = vector.extract %274[0, 0, 0] : f32 from vector<1x1x1xf32>
    %276 = vector.extract_strided_slice %256 {offsets = [0, 0], sizes = [8, 1], strides = [1, 1]} : vector<8x128xf32> to vector<8x1xf32>
    %277 = vector.broadcast %251 : f32 to vector<8x1xf32>
    %278 = arith.select %268, %277, %276 : vector<8x1xi1>, vector<8x1xf32>
    %279 = vector.shape_cast %278 : vector<8x1xf32> to vector<1x8x1xf32>
    %cst_81 = arith.constant dense<0x7F800000> : vector<1xf32>
    %280 = vector.multi_reduction <minimumf>, %279, %cst_81 [1, 2] : vector<1x8x1xf32> to vector<1xf32>
    %281 = vector.shape_cast %280 : vector<1xf32> to vector<1x1x1xf32>
    %282 = vector.extract %281[0, 0, 0] : f32 from vector<1x1x1xf32>
    %283 = arith.subf %282, %275 : f32
    %284 = vector.broadcast %283 : f32 to vector<8x128xf32>
    %285 = arith.mulf %284, %154 : vector<8x128xf32>
    %286 = vector.broadcast %275 : f32 to vector<8x128xf32>
    %287 = arith.addf %286, %285 : vector<8x128xf32>
    %288 = vector.shape_cast %147 : vector<8x128xf32> to vector<1x8x128xf32>
    %289 = vector.shape_cast %287 : vector<8x128xf32> to vector<8x1x128xf32>
    %290 = vector.broadcast %288 : vector<1x8x128xf32> to vector<8x8x128xf32>
    %291 = vector.broadcast %289 : vector<8x1x128xf32> to vector<8x8x128xf32>
    %292 = arith.cmpf ogt, %290, %291 : vector<8x8x128xf32>
    %293 = arith.extui %292 : vector<8x8x128xi1> to vector<8x8x128xi32>
    %294 = arith.sitofp %293 : vector<8x8x128xi32> to vector<8x8x128xf32>
    %cst_82 = arith.constant dense<0.000000e+00> : vector<8x8xf32>
    %295 = vector.multi_reduction <add>, %294, %cst_82 [2] : vector<8x8x128xf32> to vector<8x8xf32>
    %cst_83 = arith.constant dense<0.000000e+00> : vector<8xf32>
    %296 = vector.multi_reduction <add>, %295, %cst_83 [1] : vector<8x8xf32> to vector<8xf32>
    %297 = vector.shape_cast %296 : vector<8xf32> to vector<8x1xf32>
    %298 = vector.broadcast %148 : f32 to vector<8x1xf32>
    %299 = arith.cmpf oge, %297, %298 : vector<8x1xf32>
    %300 = vector.extract_strided_slice %287 {offsets = [0, 0], sizes = [8, 1], strides = [1, 1]} : vector<8x128xf32> to vector<8x1xf32>
    %301 = vector.broadcast %275 : f32 to vector<8x1xf32>
    %302 = arith.select %299, %300, %301 : vector<8x1xi1>, vector<8x1xf32>
    %303 = vector.shape_cast %302 : vector<8x1xf32> to vector<1x8x1xf32>
    %cst_84 = arith.constant dense<0xFF800000> : vector<1xf32>
    %304 = vector.multi_reduction <maximumf>, %303, %cst_84 [1, 2] : vector<1x8x1xf32> to vector<1xf32>
    %305 = vector.shape_cast %304 : vector<1xf32> to vector<1x1x1xf32>
    %306 = vector.extract %305[0, 0, 0] : f32 from vector<1x1x1xf32>
    %307 = vector.extract_strided_slice %287 {offsets = [0, 0], sizes = [8, 1], strides = [1, 1]} : vector<8x128xf32> to vector<8x1xf32>
    %308 = vector.broadcast %282 : f32 to vector<8x1xf32>
    %309 = arith.select %299, %308, %307 : vector<8x1xi1>, vector<8x1xf32>
    %310 = vector.shape_cast %309 : vector<8x1xf32> to vector<1x8x1xf32>
    %cst_85 = arith.constant dense<0x7F800000> : vector<1xf32>
    %311 = vector.multi_reduction <minimumf>, %310, %cst_85 [1, 2] : vector<1x8x1xf32> to vector<1xf32>
    %312 = vector.shape_cast %311 : vector<1xf32> to vector<1x1x1xf32>
    %313 = vector.extract %312[0, 0, 0] : f32 from vector<1x1x1xf32>
    %314 = arith.subf %313, %306 : f32
    %315 = vector.broadcast %314 : f32 to vector<8x128xf32>
    %316 = arith.mulf %315, %154 : vector<8x128xf32>
    %317 = vector.broadcast %306 : f32 to vector<8x128xf32>
    %318 = arith.addf %317, %316 : vector<8x128xf32>
    %319 = vector.shape_cast %147 : vector<8x128xf32> to vector<1x8x128xf32>
    %320 = vector.shape_cast %318 : vector<8x128xf32> to vector<8x1x128xf32>
    %321 = vector.broadcast %319 : vector<1x8x128xf32> to vector<8x8x128xf32>
    %322 = vector.broadcast %320 : vector<8x1x128xf32> to vector<8x8x128xf32>
    %323 = arith.cmpf ogt, %321, %322 : vector<8x8x128xf32>
    %324 = arith.extui %323 : vector<8x8x128xi1> to vector<8x8x128xi32>
    %325 = arith.sitofp %324 : vector<8x8x128xi32> to vector<8x8x128xf32>
    %cst_86 = arith.constant dense<0.000000e+00> : vector<8x8xf32>
    %326 = vector.multi_reduction <add>, %325, %cst_86 [2] : vector<8x8x128xf32> to vector<8x8xf32>
    %cst_87 = arith.constant dense<0.000000e+00> : vector<8xf32>
    %327 = vector.multi_reduction <add>, %326, %cst_87 [1] : vector<8x8xf32> to vector<8xf32>
    %328 = vector.shape_cast %327 : vector<8xf32> to vector<8x1xf32>
    %329 = vector.broadcast %148 : f32 to vector<8x1xf32>
    %330 = arith.cmpf oge, %328, %329 : vector<8x1xf32>
    %331 = vector.extract_strided_slice %318 {offsets = [0, 0], sizes = [8, 1], strides = [1, 1]} : vector<8x128xf32> to vector<8x1xf32>
    %332 = vector.broadcast %306 : f32 to vector<8x1xf32>
    %333 = arith.select %330, %331, %332 : vector<8x1xi1>, vector<8x1xf32>
    %334 = vector.shape_cast %333 : vector<8x1xf32> to vector<1x8x1xf32>
    %cst_88 = arith.constant dense<0xFF800000> : vector<1xf32>
    %335 = vector.multi_reduction <maximumf>, %334, %cst_88 [1, 2] : vector<1x8x1xf32> to vector<1xf32>
    %336 = vector.shape_cast %335 : vector<1xf32> to vector<1x1x1xf32>
    %337 = vector.extract %336[0, 0, 0] : f32 from vector<1x1x1xf32>
    %338 = vector.extract_strided_slice %318 {offsets = [0, 0], sizes = [8, 1], strides = [1, 1]} : vector<8x128xf32> to vector<8x1xf32>
    %339 = vector.broadcast %313 : f32 to vector<8x1xf32>
    %340 = arith.select %330, %339, %338 : vector<8x1xi1>, vector<8x1xf32>
    %341 = vector.shape_cast %340 : vector<8x1xf32> to vector<1x8x1xf32>
    %cst_89 = arith.constant dense<0x7F800000> : vector<1xf32>
    %342 = vector.multi_reduction <minimumf>, %341, %cst_89 [1, 2] : vector<1x8x1xf32> to vector<1xf32>
    %343 = vector.shape_cast %342 : vector<1xf32> to vector<1x1x1xf32>
    %344 = vector.extract %343[0, 0, 0] : f32 from vector<1x1x1xf32>
    %345 = arith.subf %344, %337 : f32
    %346 = vector.broadcast %345 : f32 to vector<8x128xf32>
    %347 = arith.mulf %346, %154 : vector<8x128xf32>
    %348 = vector.broadcast %337 : f32 to vector<8x128xf32>
    %349 = arith.addf %348, %347 : vector<8x128xf32>
    %350 = vector.shape_cast %147 : vector<8x128xf32> to vector<1x8x128xf32>
    %351 = vector.shape_cast %349 : vector<8x128xf32> to vector<8x1x128xf32>
    %352 = vector.broadcast %350 : vector<1x8x128xf32> to vector<8x8x128xf32>
    %353 = vector.broadcast %351 : vector<8x1x128xf32> to vector<8x8x128xf32>
    %354 = arith.cmpf ogt, %352, %353 : vector<8x8x128xf32>
    %355 = arith.extui %354 : vector<8x8x128xi1> to vector<8x8x128xi32>
    %356 = arith.sitofp %355 : vector<8x8x128xi32> to vector<8x8x128xf32>
    %cst_90 = arith.constant dense<0.000000e+00> : vector<8x8xf32>
    %357 = vector.multi_reduction <add>, %356, %cst_90 [2] : vector<8x8x128xf32> to vector<8x8xf32>
    %cst_91 = arith.constant dense<0.000000e+00> : vector<8xf32>
    %358 = vector.multi_reduction <add>, %357, %cst_91 [1] : vector<8x8xf32> to vector<8xf32>
    %359 = vector.shape_cast %358 : vector<8xf32> to vector<8x1xf32>
    %360 = vector.broadcast %148 : f32 to vector<8x1xf32>
    %361 = arith.cmpf oge, %359, %360 : vector<8x1xf32>
    %362 = vector.extract_strided_slice %349 {offsets = [0, 0], sizes = [8, 1], strides = [1, 1]} : vector<8x128xf32> to vector<8x1xf32>
    %363 = vector.broadcast %337 : f32 to vector<8x1xf32>
    %364 = arith.select %361, %362, %363 : vector<8x1xi1>, vector<8x1xf32>
    %365 = vector.shape_cast %364 : vector<8x1xf32> to vector<1x8x1xf32>
    %cst_92 = arith.constant dense<0xFF800000> : vector<1xf32>
    %366 = vector.multi_reduction <maximumf>, %365, %cst_92 [1, 2] : vector<1x8x1xf32> to vector<1xf32>
    %367 = vector.shape_cast %366 : vector<1xf32> to vector<1x1x1xf32>
    %368 = vector.extract %367[0, 0, 0] : f32 from vector<1x1x1xf32>
    %369 = vector.extract_strided_slice %349 {offsets = [0, 0], sizes = [8, 1], strides = [1, 1]} : vector<8x128xf32> to vector<8x1xf32>
    %370 = vector.broadcast %344 : f32 to vector<8x1xf32>
    %371 = arith.select %361, %370, %369 : vector<8x1xi1>, vector<8x1xf32>
    %372 = vector.shape_cast %371 : vector<8x1xf32> to vector<1x8x1xf32>
    %cst_93 = arith.constant dense<0x7F800000> : vector<1xf32>
    %373 = vector.multi_reduction <minimumf>, %372, %cst_93 [1, 2] : vector<1x8x1xf32> to vector<1xf32>
    %374 = vector.shape_cast %373 : vector<1xf32> to vector<1x1x1xf32>
    %375 = vector.extract %374[0, 0, 0] : f32 from vector<1x1x1xf32>
    %376 = arith.subf %375, %368 : f32
    %377 = vector.broadcast %376 : f32 to vector<8x128xf32>
    %378 = arith.mulf %377, %154 : vector<8x128xf32>
    %379 = vector.broadcast %368 : f32 to vector<8x128xf32>
    %380 = arith.addf %379, %378 : vector<8x128xf32>
    %381 = vector.shape_cast %147 : vector<8x128xf32> to vector<1x8x128xf32>
    %382 = vector.shape_cast %380 : vector<8x128xf32> to vector<8x1x128xf32>
    %383 = vector.broadcast %381 : vector<1x8x128xf32> to vector<8x8x128xf32>
    %384 = vector.broadcast %382 : vector<8x1x128xf32> to vector<8x8x128xf32>
    %385 = arith.cmpf ogt, %383, %384 : vector<8x8x128xf32>
    %386 = arith.extui %385 : vector<8x8x128xi1> to vector<8x8x128xi32>
    %387 = arith.sitofp %386 : vector<8x8x128xi32> to vector<8x8x128xf32>
    %cst_94 = arith.constant dense<0.000000e+00> : vector<8x8xf32>
    %388 = vector.multi_reduction <add>, %387, %cst_94 [2] : vector<8x8x128xf32> to vector<8x8xf32>
    %cst_95 = arith.constant dense<0.000000e+00> : vector<8xf32>
    %389 = vector.multi_reduction <add>, %388, %cst_95 [1] : vector<8x8xf32> to vector<8xf32>
    %390 = vector.shape_cast %389 : vector<8xf32> to vector<8x1xf32>
    %391 = vector.broadcast %148 : f32 to vector<8x1xf32>
    %392 = arith.cmpf oge, %390, %391 : vector<8x1xf32>
    %393 = vector.extract_strided_slice %380 {offsets = [0, 0], sizes = [8, 1], strides = [1, 1]} : vector<8x128xf32> to vector<8x1xf32>
    %394 = vector.broadcast %375 : f32 to vector<8x1xf32>
    %395 = arith.select %392, %394, %393 : vector<8x1xi1>, vector<8x1xf32>
    %396 = vector.shape_cast %395 : vector<8x1xf32> to vector<1x8x1xf32>
    %cst_96 = arith.constant dense<0x7F800000> : vector<1xf32>
    %397 = vector.multi_reduction <minimumf>, %396, %cst_96 [1, 2] : vector<1x8x1xf32> to vector<1xf32>
    %398 = vector.shape_cast %397 : vector<1xf32> to vector<1x1x1xf32>
    %399 = vector.extract %398[0, 0, 0] : f32 from vector<1x1x1xf32>
    %400 = vector.broadcast %399 : f32 to vector<8x128xf32>
    %401 = arith.cmpf ogt, %147, %400 : vector<8x128xf32>
    %402 = arith.extui %401 : vector<8x128xi1> to vector<8x128xi32>
    %403 = arith.sitofp %402 : vector<8x128xi32> to vector<8x128xf32>
    %404 = vector.shape_cast %403 : vector<8x128xf32> to vector<1x8x128xf32>
    %cst_97 = arith.constant dense<0.000000e+00> : vector<1xf32>
    %405 = vector.multi_reduction <add>, %404, %cst_97 [1, 2] : vector<1x8x128xf32> to vector<1xf32>
    %406 = vector.shape_cast %405 : vector<1xf32> to vector<1x1x1xf32>
    %407 = vector.extract %406[0, 0, 0] : f32 from vector<1x1x1xf32>
    %408 = arith.mulf %147, %403 : vector<8x128xf32>
    %409 = vector.shape_cast %408 : vector<8x128xf32> to vector<1x8x128xf32>
    %cst_98 = arith.constant dense<0.000000e+00> : vector<1xf32>
    %410 = vector.multi_reduction <add>, %409, %cst_98 [1, 2] : vector<1x8x128xf32> to vector<1xf32>
    %411 = vector.shape_cast %410 : vector<1xf32> to vector<1x1x1xf32>
    %412 = vector.extract %411[0, 0, 0] : f32 from vector<1x1x1xf32>
    %413 = arith.subf %148, %407 : f32
    %cst_99 = arith.constant 0.000000e+00 : f32
    %414 = arith.maximumf %413, %cst_99 : f32
    %415 = arith.mulf %414, %399 : f32
    %416 = arith.addf %412, %415 : f32
    %417 = vector.extract_strided_slice %3 {offsets = [0, 0, 0], sizes = [1, 8, 128], strides = [1, 1, 1]} : vector<4x8x128xf32> to vector<1x8x128xf32>
    %418 = vector.shape_cast %417 : vector<1x8x128xf32> to vector<8x128xf32>
    %419 = arith.subf %418, %56 : vector<8x128xf32>
    %420 = math.absf %419 : vector<8x128xf32>
    %421 = vector.extract_strided_slice %3 {offsets = [1, 0, 0], sizes = [1, 8, 128], strides = [1, 1, 1]} : vector<4x8x128xf32> to vector<1x8x128xf32>
    %422 = vector.shape_cast %421 : vector<1x8x128xf32> to vector<8x128xf32>
    %423 = arith.subf %422, %58 : vector<8x128xf32>
    %424 = math.absf %423 : vector<8x128xf32>
    %425 = arith.addf %420, %424 : vector<8x128xf32>
    %426 = vector.extract_strided_slice %3 {offsets = [2, 0, 0], sizes = [1, 8, 128], strides = [1, 1, 1]} : vector<4x8x128xf32> to vector<1x8x128xf32>
    %427 = vector.shape_cast %426 : vector<1x8x128xf32> to vector<8x128xf32>
    %428 = arith.subf %427, %65 : vector<8x128xf32>
    %429 = math.absf %428 : vector<8x128xf32>
    %430 = arith.addf %425, %429 : vector<8x128xf32>
    %431 = vector.extract_strided_slice %3 {offsets = [3, 0, 0], sizes = [1, 8, 128], strides = [1, 1, 1]} : vector<4x8x128xf32> to vector<1x8x128xf32>
    %432 = vector.shape_cast %431 : vector<1x8x128xf32> to vector<8x128xf32>
    %433 = arith.subf %432, %72 : vector<8x128xf32>
    %434 = math.absf %433 : vector<8x128xf32>
    %435 = arith.addf %430, %434 : vector<8x128xf32>
    %436 = arith.mulf %435, %39#6 : vector<8x128xf32>
    %437 = vector.shape_cast %436 : vector<8x128xf32> to vector<1x8x128xf32>
    %cst_100 = arith.constant dense<0.000000e+00> : vector<1xf32>
    %438 = vector.multi_reduction <add>, %437, %cst_100 [1, 2] : vector<1x8x128xf32> to vector<1xf32>
    %439 = vector.shape_cast %438 : vector<1xf32> to vector<1x1x1xf32>
    %440 = vector.extract %439[0, 0, 0] : f32 from vector<1x1x1xf32>
    %441 = tpu.iota {dimensions = array<i32: 2>} : vector<1x1x128xi32>
    %c0_i32_101 = arith.constant 0 : i32
    %442 = vector.broadcast %c0_i32_101 : i32 to vector<1x1x128xi32>
    %443 = arith.cmpi eq, %441, %442 : vector<1x1x128xi32>
    %cst_102 = arith.constant 0.000000e+00 : f32
    %444 = vector.broadcast %144 : f32 to vector<1x1x128xf32>
    %445 = vector.broadcast %cst_102 : f32 to vector<1x1x128xf32>
    %446 = arith.select %443, %444, %445 : vector<1x1x128xi1>, vector<1x1x128xf32>
    %c1_i32_103 = arith.constant 1 : i32
    %447 = vector.broadcast %c1_i32_103 : i32 to vector<1x1x128xi32>
    %448 = arith.cmpi eq, %441, %447 : vector<1x1x128xi32>
    %cst_104 = arith.constant 0.000000e+00 : f32
    %449 = vector.broadcast %416 : f32 to vector<1x1x128xf32>
    %450 = vector.broadcast %cst_104 : f32 to vector<1x1x128xf32>
    %451 = arith.select %448, %449, %450 : vector<1x1x128xi1>, vector<1x1x128xf32>
    %452 = arith.addf %446, %451 : vector<1x1x128xf32>
    %c2_i32_105 = arith.constant 2 : i32
    %453 = vector.broadcast %c2_i32_105 : i32 to vector<1x1x128xi32>
    %454 = arith.cmpi eq, %441, %453 : vector<1x1x128xi32>
    %cst_106 = arith.constant 0.000000e+00 : f32
    %455 = vector.broadcast %440 : f32 to vector<1x1x128xf32>
    %456 = vector.broadcast %cst_106 : f32 to vector<1x1x128xf32>
    %457 = arith.select %454, %455, %456 : vector<1x1x128xi1>, vector<1x1x128xf32>
    %458 = arith.addf %452, %457 : vector<1x1x128xf32>
    %c3_i32_107 = arith.constant 3 : i32
    %459 = vector.broadcast %c3_i32_107 : i32 to vector<1x1x128xi32>
    %460 = arith.cmpi eq, %441, %459 : vector<1x1x128xi32>
    %cst_108 = arith.constant 0.000000e+00 : f32
    %461 = vector.broadcast %43 : f32 to vector<1x1x128xf32>
    %462 = vector.broadcast %cst_108 : f32 to vector<1x1x128xf32>
    %463 = arith.select %460, %461, %462 : vector<1x1x128xi1>, vector<1x1x128xf32>
    %464 = arith.addf %458, %463 : vector<1x1x128xf32>
    %c0_109 = arith.constant 0 : index
    %c0_110 = arith.constant 0 : index
    %c0_111 = arith.constant 0 : index
    %465 = vector.load %arg5[%c0_109, %c0_110, %c0_111] : memref<1x1x128xf32, #tpu.memory_space<vmem>>, vector<1x1x128xf32>
    tpu.vector_store %arg5[%c0_109, %c0_110, %c0_111], %464 {strides = array<i32>} : memref<1x1x128xf32, #tpu.memory_space<vmem>>, vector<1x1x128xf32>,
    return
  }
  func.func @transform_0(%arg0: i32, %arg1: memref<2x15xf32, #tpu.memory_space<smem>>) -> (i32, i32, i32, i32) {
    %c0_i32 = arith.constant 0 : i32
    %c0_i32_0 = arith.constant 0 : i32
    %c0_i32_1 = arith.constant 0 : i32
    %c0_i32_2 = arith.constant 0 : i32
    return %arg0, %c0_i32, %c0_i32_0, %c0_i32_1 : i32, i32, i32, i32
  }
  func.func @transform_1(%arg0: i32, %arg1: memref<2x15xf32, #tpu.memory_space<smem>>) -> (i32, i32, i32, i32) {
    %c0_i32 = arith.constant 0 : i32
    %c0_i32_0 = arith.constant 0 : i32
    %c0_i32_1 = arith.constant 0 : i32
    %c0_i32_2 = arith.constant 0 : i32
    return %arg0, %c0_i32, %c0_i32_0, %c0_i32_1 : i32, i32, i32, i32
  }
  func.func @transform_2(%arg0: i32, %arg1: memref<2x15xf32, #tpu.memory_space<smem>>) -> (i32, i32, i32) {
    %c0_i32 = arith.constant 0 : i32
    %c0_i32_0 = arith.constant 0 : i32
    %c0_i32_1 = arith.constant 0 : i32
    %c0_i32_2 = arith.constant 0 : i32
    return %c0_i32, %c0_i32_0, %c0_i32_1 : i32, i32, i32
  }
  func.func @transform_3(%arg0: i32, %arg1: memref<2x15xf32, #tpu.memory_space<smem>>) -> (i32, i32, i32) {
    %c0_i32 = arith.constant 0 : i32
    %c0_i32_0 = arith.constant 0 : i32
    %c0_i32_1 = arith.constant 0 : i32
    return %arg0, %c0_i32, %c0_i32_0 : i32, i32, i32
  }
}

</mosaic_0001>

<llo_original>
// kernel: tpu_custom_call.1
$region0: #{tpu_custom_call.1}
  #allocation0 [shape = 'u32[]', space=smem, size = 0x4, offset = 0x4, fixed_abs, tag = 'smem constant byte address 0x4 - core index']
  #allocation1 [shape = 'u32[144,128]{1,0:T(1,128)}', space=vmem, size = 0x12000, scoped, tag = 'internal scratch']
  #allocation2 [shape = 's32[1]{0}', space=sflag, size = 0x4, scoped, tag = 'scoped memory for tpu_custom_call.1']
  #allocation3 [shape = 'u8[1024]{0}', space=smem, size = 0x400, scoped, tag = 'prefetched SMEM operand 0']
  %s0 = inlined_call_operand.hbm [shape: f32[2,15], index: 0, kind: input, shape index: {}]
  %s1 = inlined_call_operand.hbm [shape: f32[2,8,8,128], index: 1, kind: input, shape index: {}]
  %s2 = inlined_call_operand.hbm [shape: f32[2,4,8,128], index: 2, kind: input, shape index: {}]
  %s3 = inlined_call_operand.hbm [shape: f32[12,8,128], index: 3, kind: input, shape index: {}]
  %s4 = inlined_call_operand.hbm [shape: f32[2,1,128], index: 4, kind: output, shape index: {}]
  %s5 = sld [smem:[#allocation0]]
  $region64: #{tpu_custom_call.1} parent=0
    _
  %s7 = ssub.s32 1, %s5
  %s8 = scalar_select 0, %s7, %s5
  %10 = dma.hbm_to_smem %s0, 32, [#allocation3], [#allocation2]
  %11 = dma.done [#allocation2], 32
  %12 = sfence
  $region1: #{tpu_custom_call.1} parent=0
    #allocation4 [shape = 'u8[65536]{0}', space=vmem, size = 0x10000, scoped, tag = 'input window, operand 1']
    #allocation5 [shape = 's32[2]{0}', space=sflag, size = 0x8, scoped, tag = 'scoped memory for tpu_custom_call.1']
    #allocation6 [shape = 's32[2]{0}', space=sflag, size = 0x8, scoped, tag = 'scoped memory for tpu_custom_call.1']
    #allocation7 [shape = 'u8[32768]{0}', space=vmem, size = 0x8000, scoped, tag = 'input window, operand 2']
    #allocation8 [shape = 's32[2]{0}', space=sflag, size = 0x8, scoped, tag = 'scoped memory for tpu_custom_call.1']
    #allocation9 [shape = 'u8[49152]{0}', space=vmem, size = 0xc000, scoped, tag = 'input window, operand 3, single buffered']
    #allocation10 [shape = 'u8[1024]{0}', space=vmem, size = 0x400, scoped, tag = 'output window, operand 0']
    %13 = vsyncpa [#allocation5], 0
    %s14 = scalar_lea.sflag [#allocation5], 1
    %15 = vsyncpa %s14, 0
    %16 = vsyncpa [#allocation8], 0
    %s17 = scalar_lea.sflag [#allocation8], 1
    %18 = vsyncpa %s17, 0
    %19 = vsyncpa [#allocation6], 0
    %s20 = scalar_lea.sflag [#allocation6], 1
    %21 = vsyncpa %s20, 0
    loop: start=0, step=1, limit=4
    $region2: #{tpu_custom_call.1} parent=1 // loop_pre_header
      _
    $region3: #{tpu_custom_call.1} parent=1 // loop_header
      %s23 = sphi 0, %s27
      %p24 = scmp.ge.s32.totalorder %s23, 4
      %s33 = sphi 0, %s35
      %s36 = sphi 0, %s33
      %s37 = sphi 0, %s36
      %s53 = sphi 0, %s37
      %s59 = sphi 0, %s61
      %s62 = sphi 0, %s59
      %s63 = sphi 0, %s62
      %s79 = sphi 0, %s63
      %s83 = sphi 0, %s83
      %s85 = sphi 0, %s83
      %s86 = sphi 0, %s85
      %s100 = sphi 0, %s86
      %s106 = sphi 0, %s108
      %s109 = sphi 0, %s106
      %s110 = sphi 0, %s109
      %s126 = sphi 0, %s110
    $region4: #{tpu_custom_call.1} parent=1 // loop_header_branch
      %26 = sbr.rel (%p24) target = $region8
    $region5: #{tpu_custom_call.1} parent=1 // loop_body
      %s28 = ssub.s32 %s23, 1
      %s29 = ssub.s32 %s23, 2
      %s30 = sadd.s32 %s23, 1
      %s31 = ssub.s32 %s23, %s30
      %p32 = scmp.eq.s32.totalorder %s31, 0
      %s34 = sadd.s32 %s33, 1
      %s35 = scalar_select %p32, %s33, %s34
      %p38 = pneg %p32
      %p39 = scmp.eq.s32.totalorder %s23, 1
      %p40 = por %p38, %p39
      %p41 = scmp.ne.s32.totalorder %s33, %s36
      %p42 = scmp.eq.s32.totalorder %s23, 0
      %p43 = por %p41, %p42
      %p44 = scmp.ne.s32.totalorder %s33, %s36
      %p45 = scmp.eq.s32.totalorder %s28, 1
      %p46 = por %p44, %p45
      %p47 = scmp.ne.s32.totalorder %s36, %s37
      %p48 = scmp.eq.s32.totalorder %s28, 0
      %p49 = por %p47, %p48
      %p50 = scmp.ne.s32.totalorder %s36, %s37
      %p51 = scmp.eq.s32.totalorder %s29, 1
      %p52 = por %p50, %p51
      %p54 = scmp.ne.s32.totalorder %s37, %s53
      %p55 = scmp.eq.s32.totalorder %s29, 0
      %p56 = por %p54, %p55
      %s57 = ssub.s32 %s23, %s30
      %p58 = scmp.eq.s32.totalorder %s57, 0
      %s60 = sadd.s32 %s59, 1
      %s61 = scalar_select %p58, %s59, %s60
      %p64 = pneg %p58
      %p65 = scmp.eq.s32.totalorder %s23, 1
      %p66 = por %p64, %p65
      %p67 = scmp.ne.s32.totalorder %s59, %s62
      %p68 = scmp.eq.s32.totalorder %s23, 0
      %p69 = por %p67, %p68
      %p70 = scmp.ne.s32.totalorder %s59, %s62
      %p71 = scmp.eq.s32.totalorder %s28, 1
      %p72 = por %p70, %p71
      %p73 = scmp.ne.s32.totalorder %s62, %s63
      %p74 = scmp.eq.s32.totalorder %s28, 0
      %p75 = por %p73, %p74
      %p76 = scmp.ne.s32.totalorder %s62, %s63
      %p77 = scmp.eq.s32.totalorder %s29, 1
      %p78 = por %p76, %p77
      %p80 = scmp.ne.s32.totalorder %s63, %s79
      %p81 = scmp.eq.s32.totalorder %s29, 0
      %p82 = por %p80, %p81
      %s84 = sadd.s32 %s83, 1
      %p87 = scmp.eq.s32.totalorder %s23, 1
      %p88 = scmp.ne.s32.totalorder %s83, %s85
      %p89 = scmp.eq.s32.totalorder %s23, 0
      %p90 = por %p88, %p89
      %p91 = scmp.ne.s32.totalorder %s83, %s85
      %p92 = scmp.eq.s32.totalorder %s28, 1
      %p93 = por %p91, %p92
      %p94 = scmp.ne.s32.totalorder %s85, %s86
      %p95 = scmp.eq.s32.totalorder %s28, 0
      %p96 = por %p94, %p95
      %p97 = scmp.ne.s32.totalorder %s85, %s86
      %p98 = scmp.eq.s32.totalorder %s29, 1
      %p99 = por %p97, %p98
      %p101 = scmp.ne.s32.totalorder %s86, %s100
      %p102 = scmp.eq.s32.totalorder %s29, 0
      %p103 = por %p101, %p102
      %s104 = ssub.s32 %s23, %s30
      %p105 = scmp.eq.s32.totalorder %s104, 0
      %s107 = sadd.s32 %s106, 1
      %s108 = scalar_select %p105, %s106, %s107
      %p111 = pneg %p105
      %p112 = scmp.eq.s32.totalorder %s23, 1
      %p113 = por %p111, %p112
      %p114 = scmp.ne.s32.totalorder %s106, %s109
      %p115 = scmp.eq.s32.totalorder %s23, 0
      %p116 = por %p114, %p115
      %p117 = scmp.ne.s32.totalorder %s106, %s109
      %p118 = scmp.eq.s32.totalorder %s28, 1
      %p119 = por %p117, %p118
      %p120 = scmp.ne.s32.totalorder %s109, %s110
      %p121 = scmp.eq.s32.totalorder %s28, 0
      %p122 = por %p120, %p121
      %p123 = scmp.ne.s32.totalorder %s109, %s110
      %p124 = scmp.eq.s32.totalorder %s29, 1
      %p125 = por %p123, %p124
      %p127 = scmp.ne.s32.totalorder %s110, %s126
      %p128 = scmp.eq.s32.totalorder %s29, 0
      %p129 = por %p127, %p128
      %p130 = scmp.le.s32.totalorder 1, %s23
      %p131 = scmp.lt.s32.totalorder %s23, 3
      %p132 = pnand %p130, %p131
      %p133 = pneg %p132
      // Predicated region
      $region9: #{tpu_custom_call.1} parent=5 // pred_check
        _
      $region10: #{tpu_custom_call.1} parent=5 // pred_check_branch
        %135 = sbr.rel (%p132) target = $region12
      $region11: #{tpu_custom_call.1} parent=5 // pred_region
        %s136 = ssub.s32 %s23, 1
        // Predicated region
        $region13: #{tpu_custom_call.1} parent=11 // pred_check
          %p137 = pneg %p96
        $region14: #{tpu_custom_call.1} parent=11 // pred_check_branch
          %139 = sbr.rel (%p137) target = $region16
        $region15: #{tpu_custom_call.1} parent=11 // pred_region
          %s141 = ssub.s32 1536, 1536
          %142 = vsyncadd [#allocation8], %s141
          %s143 = sshll.u32 [#allocation9], 4
          %s144 = int_to_ptr.vmem [resolvable:$true] %s143
          %149 = dma.hbm_to_vmem [thread:$0]  %s3, 1536, %s144, [#allocation8], 128, 128, 8
        $region16: #{tpu_custom_call.1} parent=11 // pred_fallthru
          _
      $region12: #{tpu_custom_call.1} parent=5 // pred_fallthru
        _
      %p150 = scmp.lt.s32.totalorder %s23, 2
      // Predicated region
      $region17: #{tpu_custom_call.1} parent=5 // pred_check
        %p151 = pneg %p150
      $region18: #{tpu_custom_call.1} parent=5 // pred_check_branch
        %153 = sbr.rel (%p151) target = $region20
      $region19: #{tpu_custom_call.1} parent=5 // pred_region
        // Predicated region
        $region21: #{tpu_custom_call.1} parent=19 // pred_check
          %p154 = pneg %p43
        $region22: #{tpu_custom_call.1} parent=19 // pred_check_branch
          %156 = sbr.rel (%p154) target = $region24
        $region23: #{tpu_custom_call.1} parent=19 // pred_region
          %s157 = sand.u32 %s33, 1
          %s158 = scalar_lea.sflag [#allocation5], %s157
          %s159 = sand.u32 %s33, 1
          %s160 = smul.addr %s159, 64
          %s161 = scalar_lea.vmem [#allocation4], %s160
          %s163 = ssub.s32 1024, 1024
          %164 = vsyncadd %s158, %s163
          %s165 = smul.addr %s23, 8
          %s166 = smul.addr %s165, 128
          %s167 = scalar_lea.hbm %s1, %s166
          %s168 = sshll.u32 %s161, 4
          %s169 = int_to_ptr.vmem [resolvable:$true] %s168
          %174 = dma.hbm_to_vmem [thread:$0]  %s167, 1024, %s169, %s158, 128, 128, 8
        $region24: #{tpu_custom_call.1} parent=19 // pred_fallthru
          _
        // Predicated region
        $region25: #{tpu_custom_call.1} parent=19 // pred_check
          %p175 = pneg %p69
        $region26: #{tpu_custom_call.1} parent=19 // pred_check_branch
          %177 = sbr.rel (%p175) target = $region28
        $region27: #{tpu_custom_call.1} parent=19 // pred_region
          %s178 = sand.u32 %s23, 1
          %s179 = scalar_lea.sflag [#allocation8], %s178
          %s180 = sand.u32 %s59, 1
          %s181 = smul.addr %s180, 32
          %s182 = scalar_lea.vmem [#allocation7], %s181
          %s184 = ssub.s32 512, 512
          %185 = vsyncadd %s179, %s184
          %s186 = smul.addr %s23, 4
          %s187 = smul.addr %s186, 128
          %s188 = scalar_lea.hbm %s2, %s187
          %s189 = sshll.u32 %s182, 4
          %s190 = int_to_ptr.vmem [resolvable:$true] %s189
          %195 = dma.hbm_to_vmem [thread:$0]  %s188, 512, %s190, %s179, 128, 128, 8
        $region28: #{tpu_custom_call.1} parent=19 // pred_fallthru
          _
      $region20: #{tpu_custom_call.1} parent=5 // pred_fallthru
        _
      %p196 = scmp.le.s32.totalorder 1, %s23
      %p197 = scmp.lt.s32.totalorder %s23, 3
      %p198 = pnand %p196, %p197
      %p199 = pneg %p198
      // Predicated region
      $region29: #{tpu_custom_call.1} parent=5 // pred_check
        _
      $region30: #{tpu_custom_call.1} parent=5 // pred_check_branch
        %201 = sbr.rel (%p198) target = $region32
      $region31: #{tpu_custom_call.1} parent=5 // pred_region
        %s202 = ssub.s32 %s23, 1
        %s203 = sand.u32 %s36, 1
        %s204 = scalar_lea.sflag [#allocation5], %s203
        %s205 = sand.u32 %s36, 1
        %s206 = smul.addr %s205, 64
        %s207 = scalar_lea.vmem [#allocation4], %s206
        // Predicated region
        $region33: #{tpu_custom_call.1} parent=31 // pred_check
          %p208 = pneg %p49
        $region34: #{tpu_custom_call.1} parent=31 // pred_check_branch
          %210 = sbr.rel (%p208) target = $region36
        $region35: #{tpu_custom_call.1} parent=31 // pred_region
          %211 = dma.done %s204, 1024
        $region36: #{tpu_custom_call.1} parent=31 // pred_fallthru
          _
        %s212 = sand.u32 %s28, 1
        %s213 = scalar_lea.sflag [#allocation8], %s212
        %s214 = sand.u32 %s62, 1
        %s215 = smul.addr %s214, 32
        %s216 = scalar_lea.vmem [#allocation7], %s215
        // Predicated region
        $region37: #{tpu_custom_call.1} parent=31 // pred_check
          %p217 = pneg %p75
        $region38: #{tpu_custom_call.1} parent=31 // pred_check_branch
          %219 = sbr.rel (%p217) target = $region40
        $region39: #{tpu_custom_call.1} parent=31 // pred_region
          %220 = dma.done %s213, 512
        $region40: #{tpu_custom_call.1} parent=31 // pred_fallthru
          _
        // Predicated region
        $region41: #{tpu_custom_call.1} parent=31 // pred_check
          %p221 = pneg %p96
        $region42: #{tpu_custom_call.1} parent=31 // pred_check_branch
          %223 = sbr.rel (%p221) target = $region44
        $region43: #{tpu_custom_call.1} parent=31 // pred_region
          %224 = dma.done [#allocation8], 1536
        $region44: #{tpu_custom_call.1} parent=31 // pred_fallthru
          _
        %s225 = sand.u32 %s36, 1
        %s226 = scalar_lea.sflag [#allocation5], %s225
        %s227 = sand.u32 %s36, 1
        %s228 = smul.addr %s227, 64
        %s229 = scalar_lea.vmem [#allocation4], %s228
        %p230 = pneg %p49
        %p231 = pneg %p46
        %s232 = sand.u32 %s28, 1
        %s233 = scalar_lea.sflag [#allocation8], %s232
        %s234 = sand.u32 %s62, 1
        %s235 = smul.addr %s234, 32
        %s236 = scalar_lea.vmem [#allocation7], %s235
        %p237 = pneg %p75
        %p238 = pneg %p72
        %p239 = pneg %p96
        %p240 = pneg %p93
        %p241 = pneg %p122
        %p242 = pneg %p119
        %s243 = sand.u32 %s109, 1
        %s244 = scalar_lea.sflag [#allocation6], %s243
        %s245 = sand.u32 %s109, 1
        %s246 = scalar_lea.vmem [#allocation10], %s245
        %v247 = vld [vmem:[%s207] sm:$0xff]
        %v248 = vld [vmem:[%s207 + $0x8] sm:$0xff]
        %v249 = vld [vmem:[%s207 + $0x10] sm:$0xff]
        %v250 = vld [vmem:[%s207 + $0x18] sm:$0xff]
        %v251 = vld [vmem:[%s207 + $0x20] sm:$0xff]
        %v252 = vld [vmem:[%s207 + $0x28] sm:$0xff]
        %v253 = vld [vmem:[%s207 + $0x30] sm:$0xff]
        %v254 = vld [vmem:[%s207 + $0x38] sm:$0xff]
        %v255 = vld [vmem:[%s216] sm:$0xff]
        %v256 = vld [vmem:[%s216 + $0x8] sm:$0xff]
        %v257 = vld [vmem:[%s216 + $0x10] sm:$0xff]
        %v258 = vld [vmem:[%s216 + $0x18] sm:$0xff]
        %v259 = vld [vmem:[#allocation9] sm:$0xff]
        %s260 = scalar_lea.vmem [#allocation9], 8
        %v261 = vld [vmem:[%s260] sm:$0xff]
        %s262 = scalar_lea.vmem [#allocation9], 16
        %v263 = vld [vmem:[%s262] sm:$0xff]
        %s264 = scalar_lea.vmem [#allocation9], 24
        %v265 = vld [vmem:[%s264] sm:$0xff]
        %s266 = scalar_lea.vmem [#allocation9], 32
        %v267 = vld [vmem:[%s266] sm:$0xff]
        %s268 = scalar_lea.vmem [#allocation9], 40
        %v269 = vld [vmem:[%s268] sm:$0xff]
        %s270 = scalar_lea.vmem [#allocation9], 48
        %v271 = vld [vmem:[%s270] sm:$0xff]
        %s272 = scalar_lea.vmem [#allocation9], 56
        %v273 = vld [vmem:[%s272] sm:$0xff]
        %s274 = scalar_lea.vmem [#allocation9], 64
        %v275 = vld [vmem:[%s274] sm:$0xff]
        %s276 = scalar_lea.vmem [#allocation9], 72
        %v277 = vld [vmem:[%s276] sm:$0xff]
        %s278 = scalar_lea.vmem [#allocation9], 80
        %v279 = vld [vmem:[%s278] sm:$0xff]
        %s280 = scalar_lea.vmem [#allocation9], 88
        %v281 = vld [vmem:[%s280] sm:$0xff]
        %vm282 = vcmp.gt.f32.partialorder %v281, 0.5
        %v283 = vlaneseq
        %v284 = vshrl.u32 %v283, 7
        %v285 = vmul.u32 %v284, 128
        %v286 = vlaneseq
        %v287 = vand.u32 %v286, 127
        %v288 = vadd.s32 %v285, %v287
        %v289 = vcvt.s32.f32 %v288
        loop: start=0, step=1, limit=3
        $region45: #{tpu_custom_call.1} parent=31 // loop_pre_header
          _
        $region46: #{tpu_custom_call.1} parent=31 // loop_header
          %s291 = sphi 0, %s295
          %p292 = scmp.ge.s32.totalorder %s291, 3
          %v296 = vphi -2.0, %v396
          %v297 = vphi 0.0, %v397
          %v298 = vphi 0.0, %v398
          %v299 = vphi 0.0, %v399
          %v300 = vphi 0.0, %v400
          %v301 = vphi 0.0, %v402
          %v302 = vphi 0.0, %v406
        $region47: #{tpu_custom_call.1} parent=31 // loop_header_branch
          %294 = sbr.rel (%p292) target = $region51
        $region48: #{tpu_custom_call.1} parent=31 // loop_body
          %s303 = smul.u32 %s291, 5
          %s304 = sshra.s32 %s303, 7
          %s305 = sand.u32 %s303, 127
          %s306 = sadd.s32 %s304, %s28
          %s307 = smul.u32 %s306, 128
          %s308 = sshra.s32 %s303, 7
          %s309 = sand.u32 %s303, 127
          %s310 = sadd.s32 %s307, %s309
          %s311 = sld [smem:[#allocation3 + %s310]]
          %s312 = sadd.s32 %s303, 1
          %s313 = sshra.s32 %s312, 7
          %s314 = sand.u32 %s312, 127
          %s315 = sadd.s32 %s313, %s28
          %s316 = smul.u32 %s315, 128
          %s317 = sshra.s32 %s312, 7
          %s318 = sand.u32 %s312, 127
          %s319 = sadd.s32 %s316, %s318
          %s320 = sld [smem:[#allocation3 + %s319]]
          %s321 = sadd.s32 %s303, 2
          %s322 = sshra.s32 %s321, 7
          %s323 = sand.u32 %s321, 127
          %s324 = sadd.s32 %s322, %s28
          %s325 = smul.u32 %s324, 128
          %s326 = sshra.s32 %s321, 7
          %s327 = sand.u32 %s321, 127
          %s328 = sadd.s32 %s325, %s327
          %s329 = sld [smem:[#allocation3 + %s328]]
          %s330 = sadd.s32 %s303, 3
          %s331 = sshra.s32 %s330, 7
          %s332 = sand.u32 %s330, 127
          %s333 = sadd.s32 %s331, %s28
          %s334 = smul.u32 %s333, 128
          %s335 = sshra.s32 %s330, 7
          %s336 = sand.u32 %s330, 127
          %s337 = sadd.s32 %s334, %s336
          %s338 = sld [smem:[#allocation3 + %s337]]
          %s339 = sadd.s32 %s303, 4
          %s340 = sshra.s32 %s339, 7
          %s341 = sand.u32 %s339, 127
          %s342 = sadd.s32 %s340, %s28
          %s343 = smul.u32 %s342, 128
          %s344 = sshra.s32 %s339, 7
          %s345 = sand.u32 %s339, 127
          %s346 = sadd.s32 %s343, %s345
          %s347 = sld [smem:[#allocation3 + %s346]]
          %s348 = ssub.f32 %s329, %s311
          %s349 = ssub.f32 %s338, %s320
          %s350 = smul.f32 %s348, %s349
          %v351 = vstv %s311
          %v352 = vmax.f32 %v259, %v351
          %v353 = vstv %s320
          %v354 = vmax.f32 %v261, %v353
          %v355 = vstv %s329
          %v356 = vmin.f32 %v263, %v355
          %v357 = vstv %s338
          %v358 = vmin.f32 %v265, %v357
          %v359 = vsub.f32 %v356, %v352
          %v360 = vmax.f32 %v359, 0.0
          %v361 = vsub.f32 %v358, %v354
          %v362 = vmax.f32 %v361, 0.0
          %v363 = vmul.f32 %v360, %v362
          %v364 = vstv %s350
          %v365 = vadd.f32 %v267, %v364
          %v366 = vsub.f32 %v365, %v363
          %v367 = vmax.f32 %v366, 1e-10
          %v368 = vrcp.pop %v367
          %v369 = vmul.f32 %v363, %v368
          %v370 = vsel %vm282, %v369, -1.0
          %371 = vmax.xlane.f32.xlu0 %v370
          %v372 = vpop.xlane.xlu0 %371
          %v373 = vrot.slane %v372, 4
          %v374 = vmax.f32 %v372, %v373
          %v375 = vrot.slane %v374, 2
          %v376 = vmax.f32 %v374, %v375
          %v377 = vrot.slane %v376, 1
          %v378 = vmax.f32 %v376, %v377
          %s379 = vtos %v378
          %v380 = vstv %s379
          %vm381 = vcmp.eq.f32.partialorder %v370, %v380
          %v382 = vsel %vm381, %v289, 1e+09
          %383 = vmin.xlane.f32.xlu0 %v382
          %v384 = vpop.xlane.xlu0 %383
          %v385 = vrot.slane %v384, 4
          %v386 = vmin.f32 %v384, %v385
          %v387 = vrot.slane %v386, 2
          %v388 = vmin.f32 %v386, %v387
          %v389 = vrot.slane %v388, 1
          %v390 = vmin.f32 %v388, %v389
          %s391 = vtos %v390
          %v392 = vstv %s391
          %vm393 = vcmp.eq.f32.partialorder %v289, %v392
          %v394 = vsel %vm393, 1.0, %v370
          %vm395 = vcmp.gt.f32.partialorder %v394, %v296
          %v396 = vsel %vm395, %v394, %v296
          %v397 = vsel %vm395, %v351, %v297
          %v398 = vsel %vm395, %v353, %v298
          %v399 = vsel %vm395, %v355, %v299
          %v400 = vsel %vm395, %v357, %v300
          %v401 = vstv %s347
          %v402 = vsel %vm395, %v401, %v301
          %vm403 = vcmp.ge.f32.partialorder %v394, 0.5
          %v404 = vsel %vm403, 1, 0
          %v405 = vcvt.s32.f32 %v404
          %v406 = vmax.f32 %v302, %v405
        $region49: #{tpu_custom_call.1} parent=31 // loop_footer
          %s295 = sadd.s32 1, %s291
        $region50: #{tpu_custom_call.1} parent=31 // loop_footer_branch
          %290 = sbr.rel target = $region46
        $region51: #{tpu_custom_call.1} parent=31 // loop_exit
          _
        %407 = vadd.xlane.f32.xlu0 %v302
        %v408 = vpop.xlane.xlu0 %407
        %v409 = vrot.slane %v408, 4
        %v410 = vadd.f32 %v408, %v409
        %v411 = vrot.slane %v410, 2
        %v412 = vadd.f32 %v410, %v411
        %v413 = vrot.slane %v412, 1
        %v414 = vadd.f32 %v412, %v413
        %s415 = vtos %v414
        %v416 = vcvt.f32.s32.to.zero.pseudo %v301
        %v417 = vadd.s32 %v416, 1
        %v418 = vcvt.f32.s32.to.zero.pseudo %v302
        %v419 = vmul.u32 %v417, %v418
        %v420 = vadd.f32 %v297, %v299
        %v421 = vmul.f32 %v420, 0.5
        %v422 = vadd.f32 %v298, %v300
        %v423 = vmul.f32 %v422, 0.5
        %v424 = vsub.f32 %v421, %v269
        %v425 = vmul.f32 %v424, %v273
        %v426 = vsub.f32 %v423, %v271
        %v427 = vmul.f32 %v426, %v275
        %v428 = vsub.f32 %v299, %v297
        %v429 = vmax.f32 %v428, 1e-12
        %v430 = vlog2.pop %v429
        %v431 = vmul.f32 %v430, 0.6931472
        %v432 = vsub.f32 %v431, %v277
        %v433 = vmul.f32 %v432, 5.0
        %v434 = vsub.f32 %v300, %v298
        %v435 = vmax.f32 %v434, 1e-12
        %v436 = vlog2.pop %v435
        %v437 = vmul.f32 %v436, 0.6931472
        %v438 = vsub.f32 %v437, %v279
        %v439 = vmul.f32 %v438, 5.0
        %v440 = vmax.f32 %v247, %v251
        %v441 = vmax.f32 %v248, %v252
        %v442 = vmax.f32 %v249, %v253
        %v443 = vmax.f32 %v250, %v254
        %v444 = vmax.f32 %v440, %v441
        %v445 = vmax.f32 %v442, %v443
        %v446 = vmax.f32 %v444, %v445
        %v447 = vsub.f32 %v247, %v446
        %v448 = vsub.f32 %v248, %v446
        %v449 = vsub.f32 %v249, %v446
        %v450 = vsub.f32 %v250, %v446
        %v451 = vsub.f32 %v251, %v446
        %v452 = vsub.f32 %v252, %v446
        %v453 = vsub.f32 %v253, %v446
        %v454 = vsub.f32 %v254, %v446
        %v455 = vmul.f32 %v447, 1.442695
        %v456 = vpow.pop %v455
        %v457 = vmul.f32 %v448, 1.442695
        %v458 = vpow.pop %v457
        %v459 = vmul.f32 %v449, 1.442695
        %v460 = vpow.pop %v459
        %v461 = vmul.f32 %v450, 1.442695
        %v462 = vpow.pop %v461
        %v463 = vmul.f32 %v451, 1.442695
        %v464 = vpow.pop %v463
        %v465 = vmul.f32 %v452, 1.442695
        %v466 = vpow.pop %v465
        %v467 = vmul.f32 %v453, 1.442695
        %v468 = vpow.pop %v467
        %v469 = vmul.f32 %v454, 1.442695
        %v470 = vpow.pop %v469
        %v471 = vadd.f32 %v456, %v458
        %v472 = vadd.f32 %v471, %v460
        %v473 = vadd.f32 %v472, %v462
        %v474 = vadd.f32 %v473, %v464
        %v475 = vadd.f32 %v474, %v466
        %v476 = vadd.f32 %v475, %v468
        %v477 = vadd.f32 %v476, %v470
        %v478 = vlog2.pop %v477
        %v479 = vmul.f32 %v478, 0.6931472
        %v480 = vadd.f32 %v479, %v446
        %vm481 = vcmp.eq.s32.totalorder %v419, 0
        %v482 = vsel %vm481, %v247, 0.0
        %v483 = vadd.f32 %v482, 0.0
        %vm484 = vcmp.eq.s32.totalorder %v419, 1
        %v485 = vsel %vm484, %v248, 0.0
        %v486 = vadd.f32 %v483, %v485
        %vm487 = vcmp.eq.s32.totalorder %v419, 2
        %v488 = vsel %vm487, %v249, 0.0
        %v489 = vadd.f32 %v486, %v488
        %vm490 = vcmp.eq.s32.totalorder %v419, 3
        %v491 = vsel %vm490, %v250, 0.0
        %v492 = vadd.f32 %v489, %v491
        %vm493 = vcmp.eq.s32.totalorder %v419, 4
        %v494 = vsel %vm493, %v251, 0.0
        %v495 = vadd.f32 %v492, %v494
        %vm496 = vcmp.eq.s32.totalorder %v419, 5
        %v497 = vsel %vm496, %v252, 0.0
        %v498 = vadd.f32 %v495, %v497
        %vm499 = vcmp.eq.s32.totalorder %v419, 6
        %v500 = vsel %vm499, %v253, 0.0
        %v501 = vadd.f32 %v498, %v500
        %vm502 = vcmp.eq.s32.totalorder %v419, 7
        %v503 = vsel %vm502, %v254, 0.0
        %v504 = vadd.f32 %v501, %v503
        %v505 = vsub.f32 %v480, %v504
        %v506 = vmul.f32 %v505, %v281
        %v507 = vmul.f32 %v506, %v302
        %508 = vadd.xlane.f32.xlu0 %v507
        %v509 = vpop.xlane.xlu0 %508
        %v510 = vrot.slane %v509, 4
        %v511 = vadd.f32 %v509, %v510
        %v512 = vrot.slane %v511, 2
        %v513 = vadd.f32 %v511, %v512
        %v514 = vrot.slane %v513, 1
        %v515 = vadd.f32 %v513, %v514
        %s516 = vtos %v515
        %v517 = vsub.f32 1.0, %v302
        %v518 = vmul.f32 %v506, %v517
        %s519 = smul.f32 %s415, 3.0
        %v520 = vcvt.s32.f32 %v284
        %v521 = vadd.f32 %v520, 1.0
        %v522 = vmul.f32 %v521, 0.11111111
        %523 = vmax.xlane.f32.xlu0 %v518
        %v524 = vpop.xlane.xlu0 %523
        %v525 = vrot.slane %v524, 4
        %v526 = vmax.f32 %v524, %v525
        %v527 = vrot.slane %v526, 2
        %v528 = vmax.f32 %v526, %v527
        %v529 = vrot.slane %v528, 1
        %v530 = vmax.f32 %v528, %v529
        %s531 = vtos %v530
        %v532 = vstv %s531
        %v533 = vmul.f32 %v532, %v522
        %v534 = vadd.f32 %v533, 0.0
        %v536 = vlaneseq
        %v537 = vshrl.u32 %v536, 7
        %v538 = vsub.s32 0, %v537
        %v539 = vrot.slane %v534, %v538
        %v540 = vlaneseq
        %v541 = vshrl.u32 %v540, 7
        %v542 = vsub.s32 1, %v541
        %v543 = vrot.slane %v534, %v542
        %v544 = vlaneseq
        %v545 = vshrl.u32 %v544, 7
        %v546 = vsub.s32 2, %v545
        %v547 = vrot.slane %v534, %v546
        %v548 = vlaneseq
        %v549 = vshrl.u32 %v548, 7
        %v550 = vsub.s32 3, %v549
        %v551 = vrot.slane %v534, %v550
        %v552 = vlaneseq
        %v553 = vshrl.u32 %v552, 7
        %v554 = vsub.s32 4, %v553
        %v555 = vrot.slane %v534, %v554
        %v556 = vlaneseq
        %v557 = vshrl.u32 %v556, 7
        %v558 = vsub.s32 5, %v557
        %v559 = vrot.slane %v534, %v558
        %v560 = vlaneseq
        %v561 = vshrl.u32 %v560, 7
        %v562 = vsub.s32 6, %v561
        %v563 = vrot.slane %v534, %v562
        %v564 = vlaneseq
        %v565 = vshrl.u32 %v564, 7
        %v566 = vsub.s32 7, %v565
        %v567 = vrot.slane %v534, %v566
        %vm576 = vcmp.gt.f32.partialorder %v518, %v539
        %vm577 = vcmp.gt.f32.partialorder %v518, %v543
        %vm578 = vcmp.gt.f32.partialorder %v518, %v547
        %vm579 = vcmp.gt.f32.partialorder %v518, %v551
        %vm580 = vcmp.gt.f32.partialorder %v518, %v555
        %vm581 = vcmp.gt.f32.partialorder %v518, %v559
        %vm582 = vcmp.gt.f32.partialorder %v518, %v563
        %vm583 = vcmp.gt.f32.partialorder %v518, %v567
        %v584 = vsel %vm576, 1, 0
        %v585 = vsel %vm577, 1, 0
        %v586 = vsel %vm578, 1, 0
        %v587 = vsel %vm579, 1, 0
        %v588 = vsel %vm580, 1, 0
        %v589 = vsel %vm581, 1, 0
        %v590 = vsel %vm582, 1, 0
        %v591 = vsel %vm583, 1, 0
        %v592 = vcvt.s32.f32 %v584
        %v593 = vcvt.s32.f32 %v585
        %v594 = vcvt.s32.f32 %v586
        %v595 = vcvt.s32.f32 %v587
        %v596 = vcvt.s32.f32 %v588
        %v597 = vcvt.s32.f32 %v589
        %v598 = vcvt.s32.f32 %v590
        %v599 = vcvt.s32.f32 %v591
        %600 = vadd.xlane.f32.xlu0 %v592
        %v601 = vpop.xlane.xlu0 %600
        %602 = vadd.xlane.f32.xlu0 %v593
        %v603 = vpop.xlane.xlu0 %602
        %604 = vadd.xlane.f32.xlu0 %v594
        %v605 = vpop.xlane.xlu0 %604
        %606 = vadd.xlane.f32.xlu0 %v595
        %v607 = vpop.xlane.xlu0 %606
        %608 = vadd.xlane.f32.xlu0 %v596
        %v609 = vpop.xlane.xlu0 %608
        %610 = vadd.xlane.f32.xlu0 %v597
        %v611 = vpop.xlane.xlu0 %610
        %612 = vadd.xlane.f32.xlu0 %v598
        %v613 = vpop.xlane.xlu0 %612
        %614 = vadd.xlane.f32.xlu0 %v599
        %v615 = vpop.xlane.xlu0 %614
        %v624 = vlaneseq
        %v625 = vshrl.u32 %v624, 7
        %v626 = vsub.s32 %v287, %v625
        %v627 = vrot.slane %v601, %v626
        %v628 = vlaneseq
        %v629 = vshrl.u32 %v628, 7
        %v630 = vsub.s32 %v287, %v629
        %v631 = vrot.slane %v603, %v630
        %v632 = vlaneseq
        %v633 = vshrl.u32 %v632, 7
        %v634 = vsub.s32 %v287, %v633
        %v635 = vrot.slane %v605, %v634
        %v636 = vlaneseq
        %v637 = vshrl.u32 %v636, 7
        %v638 = vsub.s32 %v287, %v637
        %v639 = vrot.slane %v607, %v638
        %v640 = vlaneseq
        %v641 = vshrl.u32 %v640, 7
        %v642 = vsub.s32 %v287, %v641
        %v643 = vrot.slane %v609, %v642
        %v644 = vlaneseq
        %v645 = vshrl.u32 %v644, 7
        %v646 = vsub.s32 %v287, %v645
        %v647 = vrot.slane %v611, %v646
        %v648 = vlaneseq
        %v649 = vshrl.u32 %v648, 7
        %v650 = vsub.s32 %v287, %v649
        %v651 = vrot.slane %v613, %v650
        %v652 = vlaneseq
        %v653 = vshrl.u32 %v652, 7
        %v654 = vsub.s32 %v287, %v653
        %v655 = vrot.slane %v615, %v654
        %vm656 = vcmask 1041409
        %v657 = vsel %vm656, %v631, %v627
        %vm658 = vcmask 1042434
        %v659 = vsel %vm658, %v635, %v657
        %vm660 = vcmask 1043459
        %v661 = vsel %vm660, %v639, %v659
        %vm662 = vcmask 1044484
        %v663 = vsel %vm662, %v643, %v661
        %vm664 = vcmask 1045509
        %v665 = vsel %vm664, %v647, %v663
        %vm666 = vcmask 1046534
        %v667 = vsel %vm666, %v651, %v665
        %vm668 = vcmask 1047559
        %v669 = vsel %vm668, %v655, %v667
        %vm671 = vcmask 64512
        %v672 = vsel %vm671, %v669, 0.0
        %673 = vadd.xlane.f32.xlu0 %v672
        %v674 = vpop.xlane.xlu0 %673
        %v675 = vstv %s519
        %vm676 = vcmp.ge.f32.partialorder %v674, %v675
        %v677 = vsel %vm676, %v534, 0.0
        %v678 = vrot.slane %v677, 4
        %v679 = vmax.f32 %v677, %v678
        %v680 = vrot.slane %v679, 2
        %v681 = vmax.f32 %v679, %v680
        %v682 = vrot.slane %v681, 1
        %v683 = vmax.f32 %v681, %v682
        %s684 = vtos %v683
        %v685 = vsel %vm676, %v532, %v534
        %v686 = vrot.slane %v685, 4
        %v687 = vmin.f32 %v685, %v686
        %v688 = vrot.slane %v687, 2
        %v689 = vmin.f32 %v687, %v688
        %v690 = vrot.slane %v689, 1
        %v691 = vmin.f32 %v689, %v690
        %s692 = vtos %v691
        %s693 = ssub.f32 %s692, %s684
        %v694 = vstv %s693
        %v695 = vmul.f32 %v694, %v522
        %v696 = vstv %s684
        %v697 = vadd.f32 %v696, %v695
        %v699 = vlaneseq
        %v700 = vshrl.u32 %v699, 7
        %v701 = vsub.s32 0, %v700
        %v702 = vrot.slane %v697, %v701
        %v703 = vlaneseq
        %v704 = vshrl.u32 %v703, 7
        %v705 = vsub.s32 1, %v704
        %v706 = vrot.slane %v697, %v705
        %v707 = vlaneseq
        %v708 = vshrl.u32 %v707, 7
        %v709 = vsub.s32 2, %v708
        %v710 = vrot.slane %v697, %v709
        %v711 = vlaneseq
        %v712 = vshrl.u32 %v711, 7
        %v713 = vsub.s32 3, %v712
        %v714 = vrot.slane %v697, %v713
        %v715 = vlaneseq
        %v716 = vshrl.u32 %v715, 7
        %v717 = vsub.s32 4, %v716
        %v718 = vrot.slane %v697, %v717
        %v719 = vlaneseq
        %v720 = vshrl.u32 %v719, 7
        %v721 = vsub.s32 5, %v720
        %v722 = vrot.slane %v697, %v721
        %v723 = vlaneseq
        %v724 = vshrl.u32 %v723, 7
        %v725 = vsub.s32 6, %v724
        %v726 = vrot.slane %v697, %v725
        %v727 = vlaneseq
        %v728 = vshrl.u32 %v727, 7
        %v729 = vsub.s32 7, %v728
        %v730 = vrot.slane %v697, %v729
        %vm739 = vcmp.gt.f32.partialorder %v518, %v702
        %vm740 = vcmp.gt.f32.partialorder %v518, %v706
        %vm741 = vcmp.gt.f32.partialorder %v518, %v710
        %vm742 = vcmp.gt.f32.partialorder %v518, %v714
        %vm743 = vcmp.gt.f32.partialorder %v518, %v718
        %vm744 = vcmp.gt.f32.partialorder %v518, %v722
        %vm745 = vcmp.gt.f32.partialorder %v518, %v726
        %vm746 = vcmp.gt.f32.partialorder %v518, %v730
        %v747 = vsel %vm739, 1, 0
        %v748 = vsel %vm740, 1, 0
        %v749 = vsel %vm741, 1, 0
        %v750 = vsel %vm742, 1, 0
        %v751 = vsel %vm743, 1, 0
        %v752 = vsel %vm744, 1, 0
        %v753 = vsel %vm745, 1, 0
        %v754 = vsel %vm746, 1, 0
        %v755 = vcvt.s32.f32 %v747
        %v756 = vcvt.s32.f32 %v748
        %v757 = vcvt.s32.f32 %v749
        %v758 = vcvt.s32.f32 %v750
        %v759 = vcvt.s32.f32 %v751
        %v760 = vcvt.s32.f32 %v752
        %v761 = vcvt.s32.f32 %v753
        %v762 = vcvt.s32.f32 %v754
        %763 = vadd.xlane.f32.xlu0 %v755
        %v764 = vpop.xlane.xlu0 %763
        %765 = vadd.xlane.f32.xlu0 %v756
        %v766 = vpop.xlane.xlu0 %765
        %767 = vadd.xlane.f32.xlu0 %v757
        %v768 = vpop.xlane.xlu0 %767
        %769 = vadd.xlane.f32.xlu0 %v758
        %v770 = vpop.xlane.xlu0 %769
        %771 = vadd.xlane.f32.xlu0 %v759
        %v772 = vpop.xlane.xlu0 %771
        %773 = vadd.xlane.f32.xlu0 %v760
        %v774 = vpop.xlane.xlu0 %773
        %775 = vadd.xlane.f32.xlu0 %v761
        %v776 = vpop.xlane.xlu0 %775
        %777 = vadd.xlane.f32.xlu0 %v762
        %v778 = vpop.xlane.xlu0 %777
        %v787 = vlaneseq
        %v788 = vshrl.u32 %v787, 7
        %v789 = vsub.s32 %v287, %v788
        %v790 = vrot.slane %v764, %v789
        %v791 = vlaneseq
        %v792 = vshrl.u32 %v791, 7
        %v793 = vsub.s32 %v287, %v792
        %v794 = vrot.slane %v766, %v793
        %v795 = vlaneseq
        %v796 = vshrl.u32 %v795, 7
        %v797 = vsub.s32 %v287, %v796
        %v798 = vrot.slane %v768, %v797
        %v799 = vlaneseq
        %v800 = vshrl.u32 %v799, 7
        %v801 = vsub.s32 %v287, %v800
        %v802 = vrot.slane %v770, %v801
        %v803 = vlaneseq
        %v804 = vshrl.u32 %v803, 7
        %v805 = vsub.s32 %v287, %v804
        %v806 = vrot.slane %v772, %v805
        %v807 = vlaneseq
        %v808 = vshrl.u32 %v807, 7
        %v809 = vsub.s32 %v287, %v808
        %v810 = vrot.slane %v774, %v809
        %v811 = vlaneseq
        %v812 = vshrl.u32 %v811, 7
        %v813 = vsub.s32 %v287, %v812
        %v814 = vrot.slane %v776, %v813
        %v815 = vlaneseq
        %v816 = vshrl.u32 %v815, 7
        %v817 = vsub.s32 %v287, %v816
        %v818 = vrot.slane %v778, %v817
        %v819 = vsel %vm656, %v794, %v790
        %v820 = vsel %vm658, %v798, %v819
        %v821 = vsel %vm660, %v802, %v820
        %v822 = vsel %vm662, %v806, %v821
        %v823 = vsel %vm664, %v810, %v822
        %v824 = vsel %vm666, %v814, %v823
        %v825 = vsel %vm668, %v818, %v824
        %v827 = vsel %vm671, %v825, 0.0
        %828 = vadd.xlane.f32.xlu0 %v827
        %v829 = vpop.xlane.xlu0 %828
        %vm830 = vcmp.ge.f32.partialorder %v829, %v675
        %v831 = vsel %vm830, %v697, %v696
        %v832 = vrot.slane %v831, 4
        %v833 = vmax.f32 %v831, %v832
        %v834 = vrot.slane %v833, 2
        %v835 = vmax.f32 %v833, %v834
        %v836 = vrot.slane %v835, 1
        %v837 = vmax.f32 %v835, %v836
        %s838 = vtos %v837
        %v839 = vstv %s692
        %v840 = vsel %vm830, %v839, %v697
        %v841 = vrot.slane %v840, 4
        %v842 = vmin.f32 %v840, %v841
        %v843 = vrot.slane %v842, 2
        %v844 = vmin.f32 %v842, %v843
        %v845 = vrot.slane %v844, 1
        %v846 = vmin.f32 %v844, %v845
        %s847 = vtos %v846
        %s848 = ssub.f32 %s847, %s838
        %v849 = vstv %s848
        %v850 = vmul.f32 %v849, %v522
        %v851 = vstv %s838
        %v852 = vadd.f32 %v851, %v850
        %v854 = vlaneseq
        %v855 = vshrl.u32 %v854, 7
        %v856 = vsub.s32 0, %v855
        %v857 = vrot.slane %v852, %v856
        %v858 = vlaneseq
        %v859 = vshrl.u32 %v858, 7
        %v860 = vsub.s32 1, %v859
        %v861 = vrot.slane %v852, %v860
        %v862 = vlaneseq
        %v863 = vshrl.u32 %v862, 7
        %v864 = vsub.s32 2, %v863
        %v865 = vrot.slane %v852, %v864
        %v866 = vlaneseq
        %v867 = vshrl.u32 %v866, 7
        %v868 = vsub.s32 3, %v867
        %v869 = vrot.slane %v852, %v868
        %v870 = vlaneseq
        %v871 = vshrl.u32 %v870, 7
        %v872 = vsub.s32 4, %v871
        %v873 = vrot.slane %v852, %v872
        %v874 = vlaneseq
        %v875 = vshrl.u32 %v874, 7
        %v876 = vsub.s32 5, %v875
        %v877 = vrot.slane %v852, %v876
        %v878 = vlaneseq
        %v879 = vshrl.u32 %v878, 7
        %v880 = vsub.s32 6, %v879
        %v881 = vrot.slane %v852, %v880
        %v882 = vlaneseq
        %v883 = vshrl.u32 %v882, 7
        %v884 = vsub.s32 7, %v883
        %v885 = vrot.slane %v852, %v884
        %vm894 = vcmp.gt.f32.partialorder %v518, %v857
        %vm895 = vcmp.gt.f32.partialorder %v518, %v861
        %vm896 = vcmp.gt.f32.partialorder %v518, %v865
        %vm897 = vcmp.gt.f32.partialorder %v518, %v869
        %vm898 = vcmp.gt.f32.partialorder %v518, %v873
        %vm899 = vcmp.gt.f32.partialorder %v518, %v877
        %vm900 = vcmp.gt.f32.partialorder %v518, %v881
        %vm901 = vcmp.gt.f32.partialorder %v518, %v885
        %v902 = vsel %vm894, 1, 0
        %v903 = vsel %vm895, 1, 0
        %v904 = vsel %vm896, 1, 0
        %v905 = vsel %vm897, 1, 0
        %v906 = vsel %vm898, 1, 0
        %v907 = vsel %vm899, 1, 0
        %v908 = vsel %vm900, 1, 0
        %v909 = vsel %vm901, 1, 0
        %v910 = vcvt.s32.f32 %v902
        %v911 = vcvt.s32.f32 %v903
        %v912 = vcvt.s32.f32 %v904
        %v913 = vcvt.s32.f32 %v905
        %v914 = vcvt.s32.f32 %v906
        %v915 = vcvt.s32.f32 %v907
        %v916 = vcvt.s32.f32 %v908
        %v917 = vcvt.s32.f32 %v909
        %918 = vadd.xlane.f32.xlu0 %v910
        %v919 = vpop.xlane.xlu0 %918
        %920 = vadd.xlane.f32.xlu0 %v911
        %v921 = vpop.xlane.xlu0 %920
        %922 = vadd.xlane.f32.xlu0 %v912
        %v923 = vpop.xlane.xlu0 %922
        %924 = vadd.xlane.f32.xlu0 %v913
        %v925 = vpop.xlane.xlu0 %924
        %926 = vadd.xlane.f32.xlu0 %v914
        %v927 = vpop.xlane.xlu0 %926
        %928 = vadd.xlane.f32.xlu0 %v915
        %v929 = vpop.xlane.xlu0 %928
        %930 = vadd.xlane.f32.xlu0 %v916
        %v931 = vpop.xlane.xlu0 %930
        %932 = vadd.xlane.f32.xlu0 %v917
        %v933 = vpop.xlane.xlu0 %932
        %v942 = vlaneseq
        %v943 = vshrl.u32 %v942, 7
        %v944 = vsub.s32 %v287, %v943
        %v945 = vrot.slane %v919, %v944
        %v946 = vlaneseq
        %v947 = vshrl.u32 %v946, 7
        %v948 = vsub.s32 %v287, %v947
        %v949 = vrot.slane %v921, %v948
        %v950 = vlaneseq
        %v951 = vshrl.u32 %v950, 7
        %v952 = vsub.s32 %v287, %v951
        %v953 = vrot.slane %v923, %v952
        %v954 = vlaneseq
        %v955 = vshrl.u32 %v954, 7
        %v956 = vsub.s32 %v287, %v955
        %v957 = vrot.slane %v925, %v956
        %v958 = vlaneseq
        %v959 = vshrl.u32 %v958, 7
        %v960 = vsub.s32 %v287, %v959
        %v961 = vrot.slane %v927, %v960
        %v962 = vlaneseq
        %v963 = vshrl.u32 %v962, 7
        %v964 = vsub.s32 %v287, %v963
        %v965 = vrot.slane %v929, %v964
        %v966 = vlaneseq
        %v967 = vshrl.u32 %v966, 7
        %v968 = vsub.s32 %v287, %v967
        %v969 = vrot.slane %v931, %v968
        %v970 = vlaneseq
        %v971 = vshrl.u32 %v970, 7
        %v972 = vsub.s32 %v287, %v971
        %v973 = vrot.slane %v933, %v972
        %v974 = vsel %vm656, %v949, %v945
        %v975 = vsel %vm658, %v953, %v974
        %v976 = vsel %vm660, %v957, %v975
        %v977 = vsel %vm662, %v961, %v976
        %v978 = vsel %vm664, %v965, %v977
        %v979 = vsel %vm666, %v969, %v978
        %v980 = vsel %vm668, %v973, %v979
        %v982 = vsel %vm671, %v980, 0.0
        %983 = vadd.xlane.f32.xlu0 %v982
        %v984 = vpop.xlane.xlu0 %983
        %vm985 = vcmp.ge.f32.partialorder %v984, %v675
        %v986 = vsel %vm985, %v852, %v851
        %v987 = vrot.slane %v986, 4
        %v988 = vmax.f32 %v986, %v987
        %v989 = vrot.slane %v988, 2
        %v990 = vmax.f32 %v988, %v989
        %v991 = vrot.slane %v990, 1
        %v992 = vmax.f32 %v990, %v991
        %s993 = vtos %v992
        %v994 = vstv %s847
        %v995 = vsel %vm985, %v994, %v852
        %v996 = vrot.slane %v995, 4
        %v997 = vmin.f32 %v995, %v996
        %v998 = vrot.slane %v997, 2
        %v999 = vmin.f32 %v997, %v998
        %v1000 = vrot.slane %v999, 1
        %v1001 = vmin.f32 %v999, %v1000
        %s1002 = vtos %v1001
        %s1003 = ssub.f32 %s1002, %s993
        %v1004 = vstv %s1003
        %v1005 = vmul.f32 %v1004, %v522
        %v1006 = vstv %s993
        %v1007 = vadd.f32 %v1006, %v1005
        %v1009 = vlaneseq
        %v1010 = vshrl.u32 %v1009, 7
        %v1011 = vsub.s32 0, %v1010
        %v1012 = vrot.slane %v1007, %v1011
        %v1013 = vlaneseq
        %v1014 = vshrl.u32 %v1013, 7
        %v1015 = vsub.s32 1, %v1014
        %v1016 = vrot.slane %v1007, %v1015
        %v1017 = vlaneseq
        %v1018 = vshrl.u32 %v1017, 7
        %v1019 = vsub.s32 2, %v1018
        %v1020 = vrot.slane %v1007, %v1019
        %v1021 = vlaneseq
        %v1022 = vshrl.u32 %v1021, 7
        %v1023 = vsub.s32 3, %v1022
        %v1024 = vrot.slane %v1007, %v1023
        %v1025 = vlaneseq
        %v1026 = vshrl.u32 %v1025, 7
        %v1027 = vsub.s32 4, %v1026
        %v1028 = vrot.slane %v1007, %v1027
        %v1029 = vlaneseq
        %v1030 = vshrl.u32 %v1029, 7
        %v1031 = vsub.s32 5, %v1030
        %v1032 = vrot.slane %v1007, %v1031
        %v1033 = vlaneseq
        %v1034 = vshrl.u32 %v1033, 7
        %v1035 = vsub.s32 6, %v1034
        %v1036 = vrot.slane %v1007, %v1035
        %v1037 = vlaneseq
        %v1038 = vshrl.u32 %v1037, 7
        %v1039 = vsub.s32 7, %v1038
        %v1040 = vrot.slane %v1007, %v1039
        %vm1049 = vcmp.gt.f32.partialorder %v518, %v1012
        %vm1050 = vcmp.gt.f32.partialorder %v518, %v1016
        %vm1051 = vcmp.gt.f32.partialorder %v518, %v1020
        %vm1052 = vcmp.gt.f32.partialorder %v518, %v1024
        %vm1053 = vcmp.gt.f32.partialorder %v518, %v1028
        %vm1054 = vcmp.gt.f32.partialorder %v518, %v1032
        %vm1055 = vcmp.gt.f32.partialorder %v518, %v1036
        %vm1056 = vcmp.gt.f32.partialorder %v518, %v1040
        %v1057 = vsel %vm1049, 1, 0
        %v1058 = vsel %vm1050, 1, 0
        %v1059 = vsel %vm1051, 1, 0
        %v1060 = vsel %vm1052, 1, 0
        %v1061 = vsel %vm1053, 1, 0
        %v1062 = vsel %vm1054, 1, 0
        %v1063 = vsel %vm1055, 1, 0
        %v1064 = vsel %vm1056, 1, 0
        %v1065 = vcvt.s32.f32 %v1057
        %v1066 = vcvt.s32.f32 %v1058
        %v1067 = vcvt.s32.f32 %v1059
        %v1068 = vcvt.s32.f32 %v1060
        %v1069 = vcvt.s32.f32 %v1061
        %v1070 = vcvt.s32.f32 %v1062
        %v1071 = vcvt.s32.f32 %v1063
        %v1072 = vcvt.s32.f32 %v1064
        %1073 = vadd.xlane.f32.xlu0 %v1065
        %v1074 = vpop.xlane.xlu0 %1073
        %1075 = vadd.xlane.f32.xlu0 %v1066
        %v1076 = vpop.xlane.xlu0 %1075
        %1077 = vadd.xlane.f32.xlu0 %v1067
        %v1078 = vpop.xlane.xlu0 %1077
        %1079 = vadd.xlane.f32.xlu0 %v1068
        %v1080 = vpop.xlane.xlu0 %1079
        %1081 = vadd.xlane.f32.xlu0 %v1069
        %v1082 = vpop.xlane.xlu0 %1081
        %1083 = vadd.xlane.f32.xlu0 %v1070
        %v1084 = vpop.xlane.xlu0 %1083
        %1085 = vadd.xlane.f32.xlu0 %v1071
        %v1086 = vpop.xlane.xlu0 %1085
        %1087 = vadd.xlane.f32.xlu0 %v1072
        %v1088 = vpop.xlane.xlu0 %1087
        %v1097 = vlaneseq
        %v1098 = vshrl.u32 %v1097, 7
        %v1099 = vsub.s32 %v287, %v1098
        %v1100 = vrot.slane %v1074, %v1099
        %v1101 = vlaneseq
        %v1102 = vshrl.u32 %v1101, 7
        %v1103 = vsub.s32 %v287, %v1102
        %v1104 = vrot.slane %v1076, %v1103
        %v1105 = vlaneseq
        %v1106 = vshrl.u32 %v1105, 7
        %v1107 = vsub.s32 %v287, %v1106
        %v1108 = vrot.slane %v1078, %v1107
        %v1109 = vlaneseq
        %v1110 = vshrl.u32 %v1109, 7
        %v1111 = vsub.s32 %v287, %v1110
        %v1112 = vrot.slane %v1080, %v1111
        %v1113 = vlaneseq
        %v1114 = vshrl.u32 %v1113, 7
        %v1115 = vsub.s32 %v287, %v1114
        %v1116 = vrot.slane %v1082, %v1115
        %v1117 = vlaneseq
        %v1118 = vshrl.u32 %v1117, 7
        %v1119 = vsub.s32 %v287, %v1118
        %v1120 = vrot.slane %v1084, %v1119
        %v1121 = vlaneseq
        %v1122 = vshrl.u32 %v1121, 7
        %v1123 = vsub.s32 %v287, %v1122
        %v1124 = vrot.slane %v1086, %v1123
        %v1125 = vlaneseq
        %v1126 = vshrl.u32 %v1125, 7
        %v1127 = vsub.s32 %v287, %v1126
        %v1128 = vrot.slane %v1088, %v1127
        %v1129 = vsel %vm656, %v1104, %v1100
        %v1130 = vsel %vm658, %v1108, %v1129
        %v1131 = vsel %vm660, %v1112, %v1130
        %v1132 = vsel %vm662, %v1116, %v1131
        %v1133 = vsel %vm664, %v1120, %v1132
        %v1134 = vsel %vm666, %v1124, %v1133
        %v1135 = vsel %vm668, %v1128, %v1134
        %v1137 = vsel %vm671, %v1135, 0.0
        %1138 = vadd.xlane.f32.xlu0 %v1137
        %v1139 = vpop.xlane.xlu0 %1138
        %vm1140 = vcmp.ge.f32.partialorder %v1139, %v675
        %v1141 = vsel %vm1140, %v1007, %v1006
        %v1142 = vrot.slane %v1141, 4
        %v1143 = vmax.f32 %v1141, %v1142
        %v1144 = vrot.slane %v1143, 2
        %v1145 = vmax.f32 %v1143, %v1144
        %v1146 = vrot.slane %v1145, 1
        %v1147 = vmax.f32 %v1145, %v1146
        %s1148 = vtos %v1147
        %v1149 = vstv %s1002
        %v1150 = vsel %vm1140, %v1149, %v1007
        %v1151 = vrot.slane %v1150, 4
        %v1152 = vmin.f32 %v1150, %v1151
        %v1153 = vrot.slane %v1152, 2
        %v1154 = vmin.f32 %v1152, %v1153
        %v1155 = vrot.slane %v1154, 1
        %v1156 = vmin.f32 %v1154, %v1155
        %s1157 = vtos %v1156
        %s1158 = ssub.f32 %s1157, %s1148
        %v1159 = vstv %s1158
        %v1160 = vmul.f32 %v1159, %v522
        %v1161 = vstv %s1148
        %v1162 = vadd.f32 %v1161, %v1160
        %v1164 = vlaneseq
        %v1165 = vshrl.u32 %v1164, 7
        %v1166 = vsub.s32 0, %v1165
        %v1167 = vrot.slane %v1162, %v1166
        %v1168 = vlaneseq
        %v1169 = vshrl.u32 %v1168, 7
        %v1170 = vsub.s32 1, %v1169
        %v1171 = vrot.slane %v1162, %v1170
        %v1172 = vlaneseq
        %v1173 = vshrl.u32 %v1172, 7
        %v1174 = vsub.s32 2, %v1173
        %v1175 = vrot.slane %v1162, %v1174
        %v1176 = vlaneseq
        %v1177 = vshrl.u32 %v1176, 7
        %v1178 = vsub.s32 3, %v1177
        %v1179 = vrot.slane %v1162, %v1178
        %v1180 = vlaneseq
        %v1181 = vshrl.u32 %v1180, 7
        %v1182 = vsub.s32 4, %v1181
        %v1183 = vrot.slane %v1162, %v1182
        %v1184 = vlaneseq
        %v1185 = vshrl.u32 %v1184, 7
        %v1186 = vsub.s32 5, %v1185
        %v1187 = vrot.slane %v1162, %v1186
        %v1188 = vlaneseq
        %v1189 = vshrl.u32 %v1188, 7
        %v1190 = vsub.s32 6, %v1189
        %v1191 = vrot.slane %v1162, %v1190
        %v1192 = vlaneseq
        %v1193 = vshrl.u32 %v1192, 7
        %v1194 = vsub.s32 7, %v1193
        %v1195 = vrot.slane %v1162, %v1194
        %vm1204 = vcmp.gt.f32.partialorder %v518, %v1167
        %vm1205 = vcmp.gt.f32.partialorder %v518, %v1171
        %vm1206 = vcmp.gt.f32.partialorder %v518, %v1175
        %vm1207 = vcmp.gt.f32.partialorder %v518, %v1179
        %vm1208 = vcmp.gt.f32.partialorder %v518, %v1183
        %vm1209 = vcmp.gt.f32.partialorder %v518, %v1187
        %vm1210 = vcmp.gt.f32.partialorder %v518, %v1191
        %vm1211 = vcmp.gt.f32.partialorder %v518, %v1195
        %v1212 = vsel %vm1204, 1, 0
        %v1213 = vsel %vm1205, 1, 0
        %v1214 = vsel %vm1206, 1, 0
        %v1215 = vsel %vm1207, 1, 0
        %v1216 = vsel %vm1208, 1, 0
        %v1217 = vsel %vm1209, 1, 0
        %v1218 = vsel %vm1210, 1, 0
        %v1219 = vsel %vm1211, 1, 0
        %v1220 = vcvt.s32.f32 %v1212
        %v1221 = vcvt.s32.f32 %v1213
        %v1222 = vcvt.s32.f32 %v1214
        %v1223 = vcvt.s32.f32 %v1215
        %v1224 = vcvt.s32.f32 %v1216
        %v1225 = vcvt.s32.f32 %v1217
        %v1226 = vcvt.s32.f32 %v1218
        %v1227 = vcvt.s32.f32 %v1219
        %1228 = vadd.xlane.f32.xlu0 %v1220
        %v1229 = vpop.xlane.xlu0 %1228
        %1230 = vadd.xlane.f32.xlu0 %v1221
        %v1231 = vpop.xlane.xlu0 %1230
        %1232 = vadd.xlane.f32.xlu0 %v1222
        %v1233 = vpop.xlane.xlu0 %1232
        %1234 = vadd.xlane.f32.xlu0 %v1223
        %v1235 = vpop.xlane.xlu0 %1234
        %1236 = vadd.xlane.f32.xlu0 %v1224
        %v1237 = vpop.xlane.xlu0 %1236
        %1238 = vadd.xlane.f32.xlu0 %v1225
        %v1239 = vpop.xlane.xlu0 %1238
        %1240 = vadd.xlane.f32.xlu0 %v1226
        %v1241 = vpop.xlane.xlu0 %1240
        %1242 = vadd.xlane.f32.xlu0 %v1227
        %v1243 = vpop.xlane.xlu0 %1242
        %v1252 = vlaneseq
        %v1253 = vshrl.u32 %v1252, 7
        %v1254 = vsub.s32 %v287, %v1253
        %v1255 = vrot.slane %v1229, %v1254
        %v1256 = vlaneseq
        %v1257 = vshrl.u32 %v1256, 7
        %v1258 = vsub.s32 %v287, %v1257
        %v1259 = vrot.slane %v1231, %v1258
        %v1260 = vlaneseq
        %v1261 = vshrl.u32 %v1260, 7
        %v1262 = vsub.s32 %v287, %v1261
        %v1263 = vrot.slane %v1233, %v1262
        %v1264 = vlaneseq
        %v1265 = vshrl.u32 %v1264, 7
        %v1266 = vsub.s32 %v287, %v1265
        %v1267 = vrot.slane %v1235, %v1266
        %v1268 = vlaneseq
        %v1269 = vshrl.u32 %v1268, 7
        %v1270 = vsub.s32 %v287, %v1269
        %v1271 = vrot.slane %v1237, %v1270
        %v1272 = vlaneseq
        %v1273 = vshrl.u32 %v1272, 7
        %v1274 = vsub.s32 %v287, %v1273
        %v1275 = vrot.slane %v1239, %v1274
        %v1276 = vlaneseq
        %v1277 = vshrl.u32 %v1276, 7
        %v1278 = vsub.s32 %v287, %v1277
        %v1279 = vrot.slane %v1241, %v1278
        %v1280 = vlaneseq
        %v1281 = vshrl.u32 %v1280, 7
        %v1282 = vsub.s32 %v287, %v1281
        %v1283 = vrot.slane %v1243, %v1282
        %v1284 = vsel %vm656, %v1259, %v1255
        %v1285 = vsel %vm658, %v1263, %v1284
        %v1286 = vsel %vm660, %v1267, %v1285
        %v1287 = vsel %vm662, %v1271, %v1286
        %v1288 = vsel %vm664, %v1275, %v1287
        %v1289 = vsel %vm666, %v1279, %v1288
        %v1290 = vsel %vm668, %v1283, %v1289
        %v1292 = vsel %vm671, %v1290, 0.0
        %1293 = vadd.xlane.f32.xlu0 %v1292
        %v1294 = vpop.xlane.xlu0 %1293
        %vm1295 = vcmp.ge.f32.partialorder %v1294, %v675
        %v1296 = vsel %vm1295, %v1162, %v1161
        %v1297 = vrot.slane %v1296, 4
        %v1298 = vmax.f32 %v1296, %v1297
        %v1299 = vrot.slane %v1298, 2
        %v1300 = vmax.f32 %v1298, %v1299
        %v1301 = vrot.slane %v1300, 1
        %v1302 = vmax.f32 %v1300, %v1301
        %s1303 = vtos %v1302
        %v1304 = vstv %s1157
        %v1305 = vsel %vm1295, %v1304, %v1162
        %v1306 = vrot.slane %v1305, 4
        %v1307 = vmin.f32 %v1305, %v1306
        %v1308 = vrot.slane %v1307, 2
        %v1309 = vmin.f32 %v1307, %v1308
        %v1310 = vrot.slane %v1309, 1
        %v1311 = vmin.f32 %v1309, %v1310
        %s1312 = vtos %v1311
        %s1313 = ssub.f32 %s1312, %s1303
        %v1314 = vstv %s1313
        %v1315 = vmul.f32 %v1314, %v522
        %v1316 = vstv %s1303
        %v1317 = vadd.f32 %v1316, %v1315
        %v1319 = vlaneseq
        %v1320 = vshrl.u32 %v1319, 7
        %v1321 = vsub.s32 0, %v1320
        %v1322 = vrot.slane %v1317, %v1321
        %v1323 = vlaneseq
        %v1324 = vshrl.u32 %v1323, 7
        %v1325 = vsub.s32 1, %v1324
        %v1326 = vrot.slane %v1317, %v1325
        %v1327 = vlaneseq
        %v1328 = vshrl.u32 %v1327, 7
        %v1329 = vsub.s32 2, %v1328
        %v1330 = vrot.slane %v1317, %v1329
        %v1331 = vlaneseq
        %v1332 = vshrl.u32 %v1331, 7
        %v1333 = vsub.s32 3, %v1332
        %v1334 = vrot.slane %v1317, %v1333
        %v1335 = vlaneseq
        %v1336 = vshrl.u32 %v1335, 7
        %v1337 = vsub.s32 4, %v1336
        %v1338 = vrot.slane %v1317, %v1337
        %v1339 = vlaneseq
        %v1340 = vshrl.u32 %v1339, 7
        %v1341 = vsub.s32 5, %v1340
        %v1342 = vrot.slane %v1317, %v1341
        %v1343 = vlaneseq
        %v1344 = vshrl.u32 %v1343, 7
        %v1345 = vsub.s32 6, %v1344
        %v1346 = vrot.slane %v1317, %v1345
        %v1347 = vlaneseq
        %v1348 = vshrl.u32 %v1347, 7
        %v1349 = vsub.s32 7, %v1348
        %v1350 = vrot.slane %v1317, %v1349
        %vm1359 = vcmp.gt.f32.partialorder %v518, %v1322
        %vm1360 = vcmp.gt.f32.partialorder %v518, %v1326
        %vm1361 = vcmp.gt.f32.partialorder %v518, %v1330
        %vm1362 = vcmp.gt.f32.partialorder %v518, %v1334
        %vm1363 = vcmp.gt.f32.partialorder %v518, %v1338
        %vm1364 = vcmp.gt.f32.partialorder %v518, %v1342
        %vm1365 = vcmp.gt.f32.partialorder %v518, %v1346
        %vm1366 = vcmp.gt.f32.partialorder %v518, %v1350
        %v1367 = vsel %vm1359, 1, 0
        %v1368 = vsel %vm1360, 1, 0
        %v1369 = vsel %vm1361, 1, 0
        %v1370 = vsel %vm1362, 1, 0
        %v1371 = vsel %vm1363, 1, 0
        %v1372 = vsel %vm1364, 1, 0
        %v1373 = vsel %vm1365, 1, 0
        %v1374 = vsel %vm1366, 1, 0
        %v1375 = vcvt.s32.f32 %v1367
        %v1376 = vcvt.s32.f32 %v1368
        %v1377 = vcvt.s32.f32 %v1369
        %v1378 = vcvt.s32.f32 %v1370
        %v1379 = vcvt.s32.f32 %v1371
        %v1380 = vcvt.s32.f32 %v1372
        %v1381 = vcvt.s32.f32 %v1373
        %v1382 = vcvt.s32.f32 %v1374
        %1383 = vadd.xlane.f32.xlu0 %v1375
        %v1384 = vpop.xlane.xlu0 %1383
        %1385 = vadd.xlane.f32.xlu0 %v1376
        %v1386 = vpop.xlane.xlu0 %1385
        %1387 = vadd.xlane.f32.xlu0 %v1377
        %v1388 = vpop.xlane.xlu0 %1387
        %1389 = vadd.xlane.f32.xlu0 %v1378
        %v1390 = vpop.xlane.xlu0 %1389
        %1391 = vadd.xlane.f32.xlu0 %v1379
        %v1392 = vpop.xlane.xlu0 %1391
        %1393 = vadd.xlane.f32.xlu0 %v1380
        %v1394 = vpop.xlane.xlu0 %1393
        %1395 = vadd.xlane.f32.xlu0 %v1381
        %v1396 = vpop.xlane.xlu0 %1395
        %1397 = vadd.xlane.f32.xlu0 %v1382
        %v1398 = vpop.xlane.xlu0 %1397
        %v1407 = vlaneseq
        %v1408 = vshrl.u32 %v1407, 7
        %v1409 = vsub.s32 %v287, %v1408
        %v1410 = vrot.slane %v1384, %v1409
        %v1411 = vlaneseq
        %v1412 = vshrl.u32 %v1411, 7
        %v1413 = vsub.s32 %v287, %v1412
        %v1414 = vrot.slane %v1386, %v1413
        %v1415 = vlaneseq
        %v1416 = vshrl.u32 %v1415, 7
        %v1417 = vsub.s32 %v287, %v1416
        %v1418 = vrot.slane %v1388, %v1417
        %v1419 = vlaneseq
        %v1420 = vshrl.u32 %v1419, 7
        %v1421 = vsub.s32 %v287, %v1420
        %v1422 = vrot.slane %v1390, %v1421
        %v1423 = vlaneseq
        %v1424 = vshrl.u32 %v1423, 7
        %v1425 = vsub.s32 %v287, %v1424
        %v1426 = vrot.slane %v1392, %v1425
        %v1427 = vlaneseq
        %v1428 = vshrl.u32 %v1427, 7
        %v1429 = vsub.s32 %v287, %v1428
        %v1430 = vrot.slane %v1394, %v1429
        %v1431 = vlaneseq
        %v1432 = vshrl.u32 %v1431, 7
        %v1433 = vsub.s32 %v287, %v1432
        %v1434 = vrot.slane %v1396, %v1433
        %v1435 = vlaneseq
        %v1436 = vshrl.u32 %v1435, 7
        %v1437 = vsub.s32 %v287, %v1436
        %v1438 = vrot.slane %v1398, %v1437
        %v1439 = vsel %vm656, %v1414, %v1410
        %v1440 = vsel %vm658, %v1418, %v1439
        %v1441 = vsel %vm660, %v1422, %v1440
        %v1442 = vsel %vm662, %v1426, %v1441
        %v1443 = vsel %vm664, %v1430, %v1442
        %v1444 = vsel %vm666, %v1434, %v1443
        %v1445 = vsel %vm668, %v1438, %v1444
        %v1447 = vsel %vm671, %v1445, 0.0
        %1448 = vadd.xlane.f32.xlu0 %v1447
        %v1449 = vpop.xlane.xlu0 %1448
        %vm1450 = vcmp.ge.f32.partialorder %v1449, %v675
        %v1451 = vsel %vm1450, %v1317, %v1316
        %v1452 = vrot.slane %v1451, 4
        %v1453 = vmax.f32 %v1451, %v1452
        %v1454 = vrot.slane %v1453, 2
        %v1455 = vmax.f32 %v1453, %v1454
        %v1456 = vrot.slane %v1455, 1
        %v1457 = vmax.f32 %v1455, %v1456
        %s1458 = vtos %v1457
        %v1459 = vstv %s1312
        %v1460 = vsel %vm1450, %v1459, %v1317
        %v1461 = vrot.slane %v1460, 4
        %v1462 = vmin.f32 %v1460, %v1461
        %v1463 = vrot.slane %v1462, 2
        %v1464 = vmin.f32 %v1462, %v1463
        %v1465 = vrot.slane %v1464, 1
        %v1466 = vmin.f32 %v1464, %v1465
        %s1467 = vtos %v1466
        %s1468 = ssub.f32 %s1467, %s1458
        %v1469 = vstv %s1468
        %v1470 = vmul.f32 %v1469, %v522
        %v1471 = vstv %s1458
        %v1472 = vadd.f32 %v1471, %v1470
        %v1474 = vlaneseq
        %v1475 = vshrl.u32 %v1474, 7
        %v1476 = vsub.s32 0, %v1475
        %v1477 = vrot.slane %v1472, %v1476
        %v1478 = vlaneseq
        %v1479 = vshrl.u32 %v1478, 7
        %v1480 = vsub.s32 1, %v1479
        %v1481 = vrot.slane %v1472, %v1480
        %v1482 = vlaneseq
        %v1483 = vshrl.u32 %v1482, 7
        %v1484 = vsub.s32 2, %v1483
        %v1485 = vrot.slane %v1472, %v1484
        %v1486 = vlaneseq
        %v1487 = vshrl.u32 %v1486, 7
        %v1488 = vsub.s32 3, %v1487
        %v1489 = vrot.slane %v1472, %v1488
        %v1490 = vlaneseq
        %v1491 = vshrl.u32 %v1490, 7
        %v1492 = vsub.s32 4, %v1491
        %v1493 = vrot.slane %v1472, %v1492
        %v1494 = vlaneseq
        %v1495 = vshrl.u32 %v1494, 7
        %v1496 = vsub.s32 5, %v1495
        %v1497 = vrot.slane %v1472, %v1496
        %v1498 = vlaneseq
        %v1499 = vshrl.u32 %v1498, 7
        %v1500 = vsub.s32 6, %v1499
        %v1501 = vrot.slane %v1472, %v1500
        %v1502 = vlaneseq
        %v1503 = vshrl.u32 %v1502, 7
        %v1504 = vsub.s32 7, %v1503
        %v1505 = vrot.slane %v1472, %v1504
        %vm1514 = vcmp.gt.f32.partialorder %v518, %v1477
        %vm1515 = vcmp.gt.f32.partialorder %v518, %v1481
        %vm1516 = vcmp.gt.f32.partialorder %v518, %v1485
        %vm1517 = vcmp.gt.f32.partialorder %v518, %v1489
        %vm1518 = vcmp.gt.f32.partialorder %v518, %v1493
        %vm1519 = vcmp.gt.f32.partialorder %v518, %v1497
        %vm1520 = vcmp.gt.f32.partialorder %v518, %v1501
        %vm1521 = vcmp.gt.f32.partialorder %v518, %v1505
        %v1522 = vsel %vm1514, 1, 0
        %v1523 = vsel %vm1515, 1, 0
        %v1524 = vsel %vm1516, 1, 0
        %v1525 = vsel %vm1517, 1, 0
        %v1526 = vsel %vm1518, 1, 0
        %v1527 = vsel %vm1519, 1, 0
        %v1528 = vsel %vm1520, 1, 0
        %v1529 = vsel %vm1521, 1, 0
        %v1530 = vcvt.s32.f32 %v1522
        %v1531 = vcvt.s32.f32 %v1523
        %v1532 = vcvt.s32.f32 %v1524
        %v1533 = vcvt.s32.f32 %v1525
        %v1534 = vcvt.s32.f32 %v1526
        %v1535 = vcvt.s32.f32 %v1527
        %v1536 = vcvt.s32.f32 %v1528
        %v1537 = vcvt.s32.f32 %v1529
        %1538 = vadd.xlane.f32.xlu0 %v1530
        %v1539 = vpop.xlane.xlu0 %1538
        %1540 = vadd.xlane.f32.xlu0 %v1531
        %v1541 = vpop.xlane.xlu0 %1540
        %1542 = vadd.xlane.f32.xlu0 %v1532
        %v1543 = vpop.xlane.xlu0 %1542
        %1544 = vadd.xlane.f32.xlu0 %v1533
        %v1545 = vpop.xlane.xlu0 %1544
        %1546 = vadd.xlane.f32.xlu0 %v1534
        %v1547 = vpop.xlane.xlu0 %1546
        %1548 = vadd.xlane.f32.xlu0 %v1535
        %v1549 = vpop.xlane.xlu0 %1548
        %1550 = vadd.xlane.f32.xlu0 %v1536
        %v1551 = vpop.xlane.xlu0 %1550
        %1552 = vadd.xlane.f32.xlu0 %v1537
        %v1553 = vpop.xlane.xlu0 %1552
        %v1562 = vlaneseq
        %v1563 = vshrl.u32 %v1562, 7
        %v1564 = vsub.s32 %v287, %v1563
        %v1565 = vrot.slane %v1539, %v1564
        %v1566 = vlaneseq
        %v1567 = vshrl.u32 %v1566, 7
        %v1568 = vsub.s32 %v287, %v1567
        %v1569 = vrot.slane %v1541, %v1568
        %v1570 = vlaneseq
        %v1571 = vshrl.u32 %v1570, 7
        %v1572 = vsub.s32 %v287, %v1571
        %v1573 = vrot.slane %v1543, %v1572
        %v1574 = vlaneseq
        %v1575 = vshrl.u32 %v1574, 7
        %v1576 = vsub.s32 %v287, %v1575
        %v1577 = vrot.slane %v1545, %v1576
        %v1578 = vlaneseq
        %v1579 = vshrl.u32 %v1578, 7
        %v1580 = vsub.s32 %v287, %v1579
        %v1581 = vrot.slane %v1547, %v1580
        %v1582 = vlaneseq
        %v1583 = vshrl.u32 %v1582, 7
        %v1584 = vsub.s32 %v287, %v1583
        %v1585 = vrot.slane %v1549, %v1584
        %v1586 = vlaneseq
        %v1587 = vshrl.u32 %v1586, 7
        %v1588 = vsub.s32 %v287, %v1587
        %v1589 = vrot.slane %v1551, %v1588
        %v1590 = vlaneseq
        %v1591 = vshrl.u32 %v1590, 7
        %v1592 = vsub.s32 %v287, %v1591
        %v1593 = vrot.slane %v1553, %v1592
        %v1594 = vsel %vm656, %v1569, %v1565
        %v1595 = vsel %vm658, %v1573, %v1594
        %v1596 = vsel %vm660, %v1577, %v1595
        %v1597 = vsel %vm662, %v1581, %v1596
        %v1598 = vsel %vm664, %v1585, %v1597
        %v1599 = vsel %vm666, %v1589, %v1598
        %v1600 = vsel %vm668, %v1593, %v1599
        %v1602 = vsel %vm671, %v1600, 0.0
        %1603 = vadd.xlane.f32.xlu0 %v1602
        %v1604 = vpop.xlane.xlu0 %1603
        %vm1605 = vcmp.ge.f32.partialorder %v1604, %v675
        %v1606 = vsel %vm1605, %v1472, %v1471
        %v1607 = vrot.slane %v1606, 4
        %v1608 = vmax.f32 %v1606, %v1607
        %v1609 = vrot.slane %v1608, 2
        %v1610 = vmax.f32 %v1608, %v1609
        %v1611 = vrot.slane %v1610, 1
        %v1612 = vmax.f32 %v1610, %v1611
        %s1613 = vtos %v1612
        %v1614 = vstv %s1467
        %v1615 = vsel %vm1605, %v1614, %v1472
        %v1616 = vrot.slane %v1615, 4
        %v1617 = vmin.f32 %v1615, %v1616
        %v1618 = vrot.slane %v1617, 2
        %v1619 = vmin.f32 %v1617, %v1618
        %v1620 = vrot.slane %v1619, 1
        %v1621 = vmin.f32 %v1619, %v1620
        %s1622 = vtos %v1621
        %s1623 = ssub.f32 %s1622, %s1613
        %v1624 = vstv %s1623
        %v1625 = vmul.f32 %v1624, %v522
        %v1626 = vstv %s1613
        %v1627 = vadd.f32 %v1626, %v1625
        %v1629 = vlaneseq
        %v1630 = vshrl.u32 %v1629, 7
        %v1631 = vsub.s32 0, %v1630
        %v1632 = vrot.slane %v1627, %v1631
        %v1633 = vlaneseq
        %v1634 = vshrl.u32 %v1633, 7
        %v1635 = vsub.s32 1, %v1634
        %v1636 = vrot.slane %v1627, %v1635
        %v1637 = vlaneseq
        %v1638 = vshrl.u32 %v1637, 7
        %v1639 = vsub.s32 2, %v1638
        %v1640 = vrot.slane %v1627, %v1639
        %v1641 = vlaneseq
        %v1642 = vshrl.u32 %v1641, 7
        %v1643 = vsub.s32 3, %v1642
        %v1644 = vrot.slane %v1627, %v1643
        %v1645 = vlaneseq
        %v1646 = vshrl.u32 %v1645, 7
        %v1647 = vsub.s32 4, %v1646
        %v1648 = vrot.slane %v1627, %v1647
        %v1649 = vlaneseq
        %v1650 = vshrl.u32 %v1649, 7
        %v1651 = vsub.s32 5, %v1650
        %v1652 = vrot.slane %v1627, %v1651
        %v1653 = vlaneseq
        %v1654 = vshrl.u32 %v1653, 7
        %v1655 = vsub.s32 6, %v1654
        %v1656 = vrot.slane %v1627, %v1655
        %v1657 = vlaneseq
        %v1658 = vshrl.u32 %v1657, 7
        %v1659 = vsub.s32 7, %v1658
        %v1660 = vrot.slane %v1627, %v1659
        %vm1669 = vcmp.gt.f32.partialorder %v518, %v1632
        %vm1670 = vcmp.gt.f32.partialorder %v518, %v1636
        %vm1671 = vcmp.gt.f32.partialorder %v518, %v1640
        %vm1672 = vcmp.gt.f32.partialorder %v518, %v1644
        %vm1673 = vcmp.gt.f32.partialorder %v518, %v1648
        %vm1674 = vcmp.gt.f32.partialorder %v518, %v1652
        %vm1675 = vcmp.gt.f32.partialorder %v518, %v1656
        %vm1676 = vcmp.gt.f32.partialorder %v518, %v1660
        %v1677 = vsel %vm1669, 1, 0
        %v1678 = vsel %vm1670, 1, 0
        %v1679 = vsel %vm1671, 1, 0
        %v1680 = vsel %vm1672, 1, 0
        %v1681 = vsel %vm1673, 1, 0
        %v1682 = vsel %vm1674, 1, 0
        %v1683 = vsel %vm1675, 1, 0
        %v1684 = vsel %vm1676, 1, 0
        %v1685 = vcvt.s32.f32 %v1677
        %v1686 = vcvt.s32.f32 %v1678
        %v1687 = vcvt.s32.f32 %v1679
        %v1688 = vcvt.s32.f32 %v1680
        %v1689 = vcvt.s32.f32 %v1681
        %v1690 = vcvt.s32.f32 %v1682
        %v1691 = vcvt.s32.f32 %v1683
        %v1692 = vcvt.s32.f32 %v1684
        %1693 = vadd.xlane.f32.xlu0 %v1685
        %v1694 = vpop.xlane.xlu0 %1693
        %1695 = vadd.xlane.f32.xlu0 %v1686
        %v1696 = vpop.xlane.xlu0 %1695
        %1697 = vadd.xlane.f32.xlu0 %v1687
        %v1698 = vpop.xlane.xlu0 %1697
        %1699 = vadd.xlane.f32.xlu0 %v1688
        %v1700 = vpop.xlane.xlu0 %1699
        %1701 = vadd.xlane.f32.xlu0 %v1689
        %v1702 = vpop.xlane.xlu0 %1701
        %1703 = vadd.xlane.f32.xlu0 %v1690
        %v1704 = vpop.xlane.xlu0 %1703
        %1705 = vadd.xlane.f32.xlu0 %v1691
        %v1706 = vpop.xlane.xlu0 %1705
        %1707 = vadd.xlane.f32.xlu0 %v1692
        %v1708 = vpop.xlane.xlu0 %1707
        %v1717 = vlaneseq
        %v1718 = vshrl.u32 %v1717, 7
        %v1719 = vsub.s32 %v287, %v1718
        %v1720 = vrot.slane %v1694, %v1719
        %v1721 = vlaneseq
        %v1722 = vshrl.u32 %v1721, 7
        %v1723 = vsub.s32 %v287, %v1722
        %v1724 = vrot.slane %v1696, %v1723
        %v1725 = vlaneseq
        %v1726 = vshrl.u32 %v1725, 7
        %v1727 = vsub.s32 %v287, %v1726
        %v1728 = vrot.slane %v1698, %v1727
        %v1729 = vlaneseq
        %v1730 = vshrl.u32 %v1729, 7
        %v1731 = vsub.s32 %v287, %v1730
        %v1732 = vrot.slane %v1700, %v1731
        %v1733 = vlaneseq
        %v1734 = vshrl.u32 %v1733, 7
        %v1735 = vsub.s32 %v287, %v1734
        %v1736 = vrot.slane %v1702, %v1735
        %v1737 = vlaneseq
        %v1738 = vshrl.u32 %v1737, 7
        %v1739 = vsub.s32 %v287, %v1738
        %v1740 = vrot.slane %v1704, %v1739
        %v1741 = vlaneseq
        %v1742 = vshrl.u32 %v1741, 7
        %v1743 = vsub.s32 %v287, %v1742
        %v1744 = vrot.slane %v1706, %v1743
        %v1745 = vlaneseq
        %v1746 = vshrl.u32 %v1745, 7
        %v1747 = vsub.s32 %v287, %v1746
        %v1748 = vrot.slane %v1708, %v1747
        %v1749 = vsel %vm656, %v1724, %v1720
        %v1750 = vsel %vm658, %v1728, %v1749
        %v1751 = vsel %vm660, %v1732, %v1750
        %v1752 = vsel %vm662, %v1736, %v1751
        %v1753 = vsel %vm664, %v1740, %v1752
        %v1754 = vsel %vm666, %v1744, %v1753
        %v1755 = vsel %vm668, %v1748, %v1754
        %v1757 = vsel %vm671, %v1755, 0.0
        %1758 = vadd.xlane.f32.xlu0 %v1757
        %v1759 = vpop.xlane.xlu0 %1758
        %vm1760 = vcmp.ge.f32.partialorder %v1759, %v675
        %v1761 = vstv %s1622
        %v1762 = vsel %vm1760, %v1761, %v1627
        %v1763 = vrot.slane %v1762, 4
        %v1764 = vmin.f32 %v1762, %v1763
        %v1765 = vrot.slane %v1764, 2
        %v1766 = vmin.f32 %v1764, %v1765
        %v1767 = vrot.slane %v1766, 1
        %v1768 = vmin.f32 %v1766, %v1767
        %s1769 = vtos %v1768
        %v1770 = vstv %s1769
        %vm1771 = vcmp.gt.f32.partialorder %v518, %v1770
        %v1772 = vsel %vm1771, 1, 0
        %v1773 = vcvt.s32.f32 %v1772
        %1774 = vadd.xlane.f32.xlu0 %v1773
        %v1775 = vpop.xlane.xlu0 %1774
        %v1776 = vrot.slane %v1775, 4
        %v1777 = vadd.f32 %v1775, %v1776
        %v1778 = vrot.slane %v1777, 2
        %v1779 = vadd.f32 %v1777, %v1778
        %v1780 = vrot.slane %v1779, 1
        %v1781 = vadd.f32 %v1779, %v1780
        %s1782 = vtos %v1781
        %v1783 = vmul.f32 %v518, %v1773
        %1784 = vadd.xlane.f32.xlu0 %v1783
        %v1785 = vpop.xlane.xlu0 %1784
        %v1786 = vrot.slane %v1785, 4
        %v1787 = vadd.f32 %v1785, %v1786
        %v1788 = vrot.slane %v1787, 2
        %v1789 = vadd.f32 %v1787, %v1788
        %v1790 = vrot.slane %v1789, 1
        %v1791 = vadd.f32 %v1789, %v1790
        %s1792 = vtos %v1791
        %s1793 = ssub.f32 %s519, %s1782
        %s1794 = smax.f32 %s1793, 0.0
        %s1795 = smul.f32 %s1794, %s1769
        %s1796 = sadd.f32 %s1792, %s1795
        %v1797 = vsub.f32 %v255, %v425
        %v1798 = vand.u32 2147483647, %v1797
        %v1799 = vsub.f32 %v256, %v427
        %v1800 = vand.u32 2147483647, %v1799
        %v1801 = vadd.f32 %v1798, %v1800
        %v1802 = vsub.f32 %v257, %v433
        %v1803 = vand.u32 2147483647, %v1802
        %v1804 = vadd.f32 %v1801, %v1803
        %v1805 = vsub.f32 %v258, %v439
        %v1806 = vand.u32 2147483647, %v1805
        %v1807 = vadd.f32 %v1804, %v1806
        %v1808 = vmul.f32 %v1807, %v302
        %1809 = vadd.xlane.f32.xlu0 %v1808
        %v1810 = vpop.xlane.xlu0 %1809
        %v1811 = vrot.slane %v1810, 4
        %v1812 = vadd.f32 %v1810, %v1811
        %v1813 = vrot.slane %v1812, 2
        %v1814 = vadd.f32 %v1812, %v1813
        %v1815 = vrot.slane %v1814, 1
        %v1816 = vadd.f32 %v1814, %v1815
        %s1817 = vtos %v1816
        %vm1818 = vcmp.eq.s32.totalorder %v287, 0
        %v1819 = vstv %s516
        %v1820 = vsel %vm1818, %v1819, 0.0
        %vm1821 = vcmp.eq.s32.totalorder %v287, 1
        %v1822 = vstv %s1796
        %v1823 = vsel %vm1821, %v1822, 0.0
        %v1824 = vadd.f32 %v1820, %v1823
        %vm1825 = vcmp.eq.s32.totalorder %v287, 2
        %v1826 = vstv %s1817
        %v1827 = vsel %vm1825, %v1826, 0.0
        %v1828 = vadd.f32 %v1824, %v1827
        %vm1829 = vcmp.eq.s32.totalorder %v287, 3
        %v1830 = vstv %s415
        %v1831 = vsel %vm1829, %v1830, 0.0
        %v1832 = vadd.f32 %v1828, %v1831
        %1833 = vst [vmem:[%s246] sm:$0x1] %v1832
        %s1834 = sand.u32 %s109, 1
        %s1835 = scalar_lea.sflag [#allocation6], %s1834
        %s1836 = sand.u32 %s109, 1
        %s1837 = scalar_lea.vmem [#allocation10], %s1836
        // Predicated region
        $region52: #{tpu_custom_call.1} parent=31 // pred_check
          %p1838 = pneg %p119
        $region53: #{tpu_custom_call.1} parent=31 // pred_check_branch
          %1840 = sbr.rel (%p1838) target = $region55
        $region54: #{tpu_custom_call.1} parent=31 // pred_region
          %s1842 = ssub.s32 16, 16
          %1843 = vsyncadd %s1835, %s1842
          %s1844 = smul.addr %s28, 16
          %s1845 = scalar_lea.hbm %s4, %s1844
          %s1847 = sshll.u32 %s1837, 4
          %s1848 = int_to_ptr.vmem [resolvable:$true] %s1847
          %1850 = dma.vmem_to_hbm [thread:$0]  %s1848, 16, %s1845, %s1835
        $region55: #{tpu_custom_call.1} parent=31 // pred_fallthru
          _
      $region32: #{tpu_custom_call.1} parent=5 // pred_fallthru
        _
      %p1851 = scmp.le.s32.totalorder 2, %s23
      // Predicated region
      $region56: #{tpu_custom_call.1} parent=5 // pred_check
        %p1852 = pneg %p1851
      $region57: #{tpu_custom_call.1} parent=5 // pred_check_branch
        %1854 = sbr.rel (%p1852) target = $region59
      $region58: #{tpu_custom_call.1} parent=5 // pred_region
        %s1855 = ssub.s32 %s23, 2
        // Predicated region
        $region60: #{tpu_custom_call.1} parent=58 // pred_check
          %p1856 = pneg %p125
        $region61: #{tpu_custom_call.1} parent=58 // pred_check_branch
          %1858 = sbr.rel (%p1856) target = $region63
        $region62: #{tpu_custom_call.1} parent=58 // pred_region
          %s1859 = sand.u32 %s110, 1
          %s1860 = scalar_lea.sflag [#allocation6], %s1859
          %s1861 = sand.u32 %s110, 1
          %s1862 = scalar_lea.vmem [#allocation10], %s1861
          %1863 = dma.done %s1860, 16
        $region63: #{tpu_custom_call.1} parent=58 // pred_fallthru
          _
      $region59: #{tpu_custom_call.1} parent=5 // pred_fallthru
        _
    $region6: #{tpu_custom_call.1} parent=1 // loop_footer
      %s27 = sadd.s32 1, %s23
    $region7: #{tpu_custom_call.1} parent=1 // loop_footer_branch
      %22 = sbr.rel target = $region3
    $region8: #{tpu_custom_call.1} parent=1 // loop_exit
      _
    %1864 = vsyncpa [#allocation5], 1
    %s1865 = scalar_lea.sflag [#allocation5], 1
    %1866 = vsyncpa %s1865, 1
    %1867 = vsyncpa [#allocation8], 1
    %s1868 = scalar_lea.sflag [#allocation8], 1
    %1869 = vsyncpa %s1868, 1
    %1870 = vsyncpa [#allocation6], 1
    %s1871 = scalar_lea.sflag [#allocation6], 1
    %1872 = vsyncpa %s1871, 1

</llo_original>
